<compile_context>
chip_gen: v5e
topology: v5e:2x2
jax: 0.10.0
libtpu: 0.0.40
codegen_flags: <defaults>
</compile_context>

<pallas_src>
import functools
import math

import jax
import jax.numpy as jnp
from jax import lax
from jax.experimental import pallas as pl
from jax.experimental.pallas import tpu as pltpu


# ----------------------------------------------------------------------------
# Fused decoder-layer kernel
# ----------------------------------------------------------------------------
def _decoder_layer_kernel(
    q_ref, x_ref,
    sa_wqkv_ref, sa_bqkv_ref, sa_wo_ref, sa_bo_ref,
    ca_wqkv_ref, ca_bqkv_ref, ca_wo_ref, ca_bo_ref,
    n1g_ref, n1b_ref, n2g_ref, n2b_ref, n3g_ref, n3b_ref,
    w1_ref, b1_ref, w2_ref, b2_ref,
    o_ref,
    *, nhead, batch, lq, lk, eps):
    """Entire decoder layer; all intermediates live in VMEM / vregs."""

    def mm(a, b):
        # weights are pre-transposed outside the kernel -> no in-kernel .T
        return jnp.dot(a, b, preferred_element_type=jnp.float32)

    def add_layernorm(x, y, g, b):
        z = x + y
        mean = jnp.mean(z, axis=-1, keepdims=True)
        zc = z - mean
        var = jnp.mean(zc * zc, axis=-1, keepdims=True)
        return zc * lax.rsqrt(var + eps) * g + b

    def mha(q_in, kv_in, w_qkv, b_qkv, w_o, b_o, len_q, len_k, self_attention):
        d = q_in.shape[-1]
        dh = d // nhead
        scale = 1.0 / math.sqrt(dh)

        if self_attention:
            # one fused (M, D) x (D, 3D) projection
            qkv = mm(q_in, w_qkv) + b_qkv
            q = qkv[:, :d]
            k = qkv[:, d:2 * d]
            v = qkv[:, 2 * d:]
        else:
            q = mm(q_in, w_qkv[:, :d]) + b_qkv[:, :d]            # (B*len_q, D)
            kv = mm(kv_in, w_qkv[:, d:]) + b_qkv[:, d:]          # fused K/V matmul
            k = kv[:, :d]
            v = kv[:, d:]

        batch_outs = []
        for bi in range(batch):                                  # static, unrolled
            q_b = q[bi * len_q:(bi + 1) * len_q, :]
            k_b = k[bi * len_k:(bi + 1) * len_k, :]
            v_b = v[bi * len_k:(bi + 1) * len_k, :]
            out_b = None
            for h in range(nhead):                               # static, unrolled
                lo, hi = h * dh, (h + 1) * dh
                qh = q_b[:, lo:hi]
                kh = k_b[:, lo:hi]
                vh = v_b[:, lo:hi]
                # contract last axes of both operands -> A @ B^T without a .T
                s = lax.dot_general(qh, kh, (((1,), (1,)), ((), ())),
                                    preferred_element_type=jnp.float32) * scale
                m = jnp.max(s, axis=-1, keepdims=True)
                p = jnp.exp(s - m)
                denom = jnp.sum(p, axis=-1, keepdims=True)
                p = p * pl.reciprocal(denom, approx=True)        # EUP, frees VALU
                oh = mm(p, vh)                                   # (len_q, dh)
                # head-merge folded into the output projection:
                #   concat_h(oh) @ Wo == sum_h oh @ Wo[h*dh:(h+1)*dh, :]
                contrib = mm(oh, w_o[lo:hi, :])
                out_b = contrib if out_b is None else out_b + contrib
            batch_outs.append(out_b + b_o)
        return jnp.concatenate(batch_outs, axis=0)               # (B*len_q, D)

    query = q_ref[...]        # (B*Lq, D), batch-major rows
    x_kv = x_ref[...]         # (B*Lk, D)

    # self-attention + residual + norm1
    sa = mha(query, query, sa_wqkv_ref[...], sa_bqkv_ref[...],
             sa_wo_ref[...], sa_bo_ref[...], lq, lq, True)
    q1 = add_layernorm(query, sa, n1g_ref[...], n1b_ref[...])

    # cross-attention + residual + norm2
    ca = mha(q1, x_kv, ca_wqkv_ref[...], ca_bqkv_ref[...],
             ca_wo_ref[...], ca_bo_ref[...], lq, lk, False)
    q2 = add_layernorm(q1, ca, n2g_ref[...], n2b_ref[...])

    # FFN (hidden state h never leaves VMEM) + residual + norm3
    h = jnp.maximum(mm(q2, w1_ref[...]) + b1_ref[...], 0.0)
    f = mm(h, w2_ref[...]) + b2_ref[...]
    o_ref[...] = add_layernorm(q2, f, n3g_ref[...], n3b_ref[...]).astype(o_ref.dtype)


# ----------------------------------------------------------------------------
# Wrapper
# ----------------------------------------------------------------------------
def decoder_layer_forward(query, x, params, nhead, query_mask=None):
    assert query_mask is None  # TODO(synk): key_padding_mask not implemented
    Lq, B, D = query.shape
    Lk = x.shape[0]
    f32 = jnp.float32

    # batch-major 2-D slabs so each batch's rows are contiguous inside the kernel
    q2 = query.transpose(1, 0, 2).reshape(B * Lq, D).astype(f32)
    x2 = x.transpose(1, 0, 2).reshape(B * Lk, D).astype(f32)

    sa, ca = params["self_attn"], params["cross_attn"]
    row = lambda v: v.reshape(1, -1).astype(f32)

    args = (
        q2, x2,
        sa["in_proj_weight"].T.astype(f32), row(sa["in_proj_bias"]),
        sa["out_proj_weight"].T.astype(f32), row(sa["out_proj_bias"]),
        ca["in_proj_weight"].T.astype(f32), row(ca["in_proj_bias"]),
        ca["out_proj_weight"].T.astype(f32), row(ca["out_proj_bias"]),
        row(params["norm1_w"]), row(params["norm1_b"]),
        row(params["norm2_w"]), row(params["norm2_b"]),
        row(params["norm3_w"]), row(params["norm3_b"]),
        params["ffn_w1"].T.astype(f32), row(params["ffn_b1"]),
        params["ffn_w2"].T.astype(f32), row(params["ffn_b2"]),
    )

    out2 = pl.pallas_call(
        functools.partial(_decoder_layer_kernel, nhead=nhead, batch=B,
                          lq=Lq, lk=Lk, eps=1e-5),
        out_shape=jax.ShapeDtypeStruct((B * Lq, D), f32),
        compiler_params=pltpu.CompilerParams(vmem_limit_bytes=32 * 1024 * 1024),
    )(*args)

    return out2.reshape(B, Lq, D).transpose(1, 0, 2)  # back to (Lq, B, D)


# ----------------------------------------------------------------------------
# Pure-JAX reference (matches nn.MultiheadAttention / nn.LayerNorm math, eval mode)
# ----------------------------------------------------------------------------
def _reference_forward(query, x, params, nhead):
    def mha_ref(q, k, v, p):
        L, B, D = q.shape
        S = k.shape[0]
        H, Dh = nhead, D // nhead
        w_in, b_in = p["in_proj_weight"], p["in_proj_bias"]
        qp = q.reshape(L * B, D) @ w_in[:D].T + b_in[:D]
        kp = k.reshape(S * B, D) @ w_in[D:2 * D].T + b_in[D:2 * D]
        vp = v.reshape(S * B, D) @ w_in[2 * D:].T + b_in[2 * D:]
        heads = lambda t, n: t.reshape(n, B, H, Dh).transpose(1, 2, 0, 3)
        qh, kh, vh = heads(qp, L), heads(kp, S), heads(vp, S)
        s = jnp.einsum("bhqd,bhkd->bhqk", qh, kh) / math.sqrt(Dh)
        a = jax.nn.softmax(s, axis=-1)
        o = jnp.einsum("bhqk,bhkd->bhqd", a, vh)
        o = o.transpose(2, 0, 1, 3).reshape(L * B, D)
        o = o @ p["out_proj_weight"].T + p["out_proj_bias"]
        return o.reshape(L, B, D)

    def ln(z, g, b):
        m = z.mean(-1, keepdims=True)
        v = ((z - m) ** 2).mean(-1, keepdims=True)
        return (z - m) / jnp.sqrt(v + 1e-5) * g + b

    sa = mha_ref(query, query, query, params["self_attn"])
    q1 = ln(query + sa, params["norm1_w"], params["norm1_b"])
    ca = mha_ref(q1, x, x, params["cross_attn"])
    q2 = ln(q1 + ca, params["norm2_w"], params["norm2_b"])
    h = jnp.maximum(q2 @ params["ffn_w1"].T + params["ffn_b1"], 0.0)
    f = h @ params["ffn_w2"].T + params["ffn_b2"]
    return ln(q2 + f, params["norm3_w"], params["norm3_b"])


# ----------------------------------------------------------------------------
# Deterministic parameter init (shapes follow the PyTorch module)
# ----------------------------------------------------------------------------
def init_params(key, d_model, nhead):
    ks = jax.random.split(key, 16)
    s = 1.0 / math.sqrt(d_model)

    def mha_params(k1, k2):
        return {
            "in_proj_weight": jax.random.uniform(k1, (3 * d_model, d_model), jnp.float32, -s, s),
            "in_proj_bias": jnp.zeros((3 * d_model,), jnp.float32),
            "out_proj_weight": jax.random.uniform(k2, (d_model, d_model), jnp.float32, -s, s),
            "out_proj_bias": jnp.zeros((d_model,), jnp.float32),
        }

    d_ff = 4 * d_model
    sf = 1.0 / math.sqrt(d_ff)
    return {
        "self_attn": mha_params(ks[0], ks[1]),
        "cross_attn": mha_params(ks[2], ks[3]),
        "norm1_w": jnp.ones((d_model,), jnp.float32),
        "norm1_b": jnp.zeros((d_model,), jnp.float32),
        "norm2_w": jnp.ones((d_model,), jnp.float32),
        "norm2_b": jnp.zeros((d_model,), jnp.float32),
        "norm3_w": jnp.ones((d_model,), jnp.float32),
        "norm3_b": jnp.zeros((d_model,), jnp.float32),
        "ffn_w1": jax.random.uniform(ks[4], (d_ff, d_model), jnp.float32, -s, s),
        "ffn_b1": jax.random.uniform(ks[5], (d_ff,), jnp.float32, -s, s),
        "ffn_w2": jax.random.uniform(ks[6], (d_model, d_ff), jnp.float32, -sf, sf),
        "ffn_b2": jax.random.uniform(ks[7], (d_model,), jnp.float32, -sf, sf),
    }


if __name__ == "__main__":
    d_model, nhead = 32, 4
    Lq, Lkv, B = 8, 10, 2

    key = jax.random.PRNGKey(0)
    k_param, k_q, k_x = jax.random.split(key, 3)
    params = init_params(k_param, d_model, nhead)

    # layout: (seq_len, batch, d_model) — matches nn.MultiheadAttention default.
    query = jax.random.normal(k_q, (Lq, B, d_model), jnp.float32)
    x = jax.random.normal(k_x, (Lkv, B, d_model), jnp.float32)

    fwd = jax.jit(functools.partial(decoder_layer_forward, nhead=nhead))
    out = jax.block_until_ready(fwd(query, x, params))

    ref = _reference_forward(query, x, params, nhead)
    assert out.shape == (Lq, B, d_model)
    assert bool(jnp.all(jnp.isfinite(out)))
    assert float(jnp.max(jnp.abs(out - ref))) < 2e-2
    print("KERNEL_OK")
</pallas_src>

<mosaic_0001>
module attributes {stable_mosaic.version = 11 : i64} {
  func.func @_decoder_layer_kernel(%arg0: memref<16x32xf32, #tpu.memory_space<vmem>>, %arg1: memref<20x32xf32, #tpu.memory_space<vmem>>, %arg2: memref<32x96xf32, #tpu.memory_space<vmem>>, %arg3: memref<1x96xf32, #tpu.memory_space<vmem>>, %arg4: memref<32x32xf32, #tpu.memory_space<vmem>>, %arg5: memref<1x32xf32, #tpu.memory_space<vmem>>, %arg6: memref<32x96xf32, #tpu.memory_space<vmem>>, %arg7: memref<1x96xf32, #tpu.memory_space<vmem>>, %arg8: memref<32x32xf32, #tpu.memory_space<vmem>>, %arg9: memref<1x32xf32, #tpu.memory_space<vmem>>, %arg10: memref<1x32xf32, #tpu.memory_space<vmem>>, %arg11: memref<1x32xf32, #tpu.memory_space<vmem>>, %arg12: memref<1x32xf32, #tpu.memory_space<vmem>>, %arg13: memref<1x32xf32, #tpu.memory_space<vmem>>, %arg14: memref<1x32xf32, #tpu.memory_space<vmem>>, %arg15: memref<1x32xf32, #tpu.memory_space<vmem>>, %arg16: memref<32x128xf32, #tpu.memory_space<vmem>>, %arg17: memref<1x128xf32, #tpu.memory_space<vmem>>, %arg18: memref<128x32xf32, #tpu.memory_space<vmem>>, %arg19: memref<1x32xf32, #tpu.memory_space<vmem>>, %arg20: memref<16x32xf32, #tpu.memory_space<vmem>>) attributes {dimension_semantics = [], scalar_prefetch = 0 : i64, scratch_operands = 0 : i64, tpu.core_type = #tpu.core_type<tc>} {
    %c0 = arith.constant 0 : index
    %c0_0 = arith.constant 0 : index
    %0 = vector.load %arg0[%c0, %c0_0] : memref<16x32xf32, #tpu.memory_space<vmem>>, vector<16x32xf32>
    %c0_1 = arith.constant 0 : index
    %c0_2 = arith.constant 0 : index
    %1 = vector.load %arg1[%c0_1, %c0_2] : memref<20x32xf32, #tpu.memory_space<vmem>>, vector<20x32xf32>
    %c0_3 = arith.constant 0 : index
    %c0_4 = arith.constant 0 : index
    %2 = vector.load %arg2[%c0_3, %c0_4] : memref<32x96xf32, #tpu.memory_space<vmem>>, vector<32x96xf32>
    %c0_5 = arith.constant 0 : index
    %c0_6 = arith.constant 0 : index
    %3 = vector.load %arg3[%c0_5, %c0_6] : memref<1x96xf32, #tpu.memory_space<vmem>>, vector<1x96xf32>
    %c0_7 = arith.constant 0 : index
    %c0_8 = arith.constant 0 : index
    %4 = vector.load %arg4[%c0_7, %c0_8] : memref<32x32xf32, #tpu.memory_space<vmem>>, vector<32x32xf32>
    %c0_9 = arith.constant 0 : index
    %c0_10 = arith.constant 0 : index
    %5 = vector.load %arg5[%c0_9, %c0_10] : memref<1x32xf32, #tpu.memory_space<vmem>>, vector<1x32xf32>
    %cst = arith.constant dense<0.000000e+00> : vector<16x96xf32>
    %6 = tpu.matmul %0, %2, %cst {dimension_numbers = #tpu.dot_dimension_numbers<[1], [0], [0], [1], [0, 0, 1, 1], [], []>} : vector<16x32xf32>, vector<32x96xf32>, vector<16x96xf32> -> vector<16x96xf32>
    %7 = vector.broadcast %3 : vector<1x96xf32> to vector<16x96xf32>
    %8 = arith.addf %6, %7 : vector<16x96xf32>
    %9 = vector.extract_strided_slice %8 {offsets = [0, 0], sizes = [16, 32], strides = [1, 1]} : vector<16x96xf32> to vector<16x32xf32>
    %10 = vector.extract_strided_slice %8 {offsets = [0, 32], sizes = [16, 32], strides = [1, 1]} : vector<16x96xf32> to vector<16x32xf32>
    %11 = vector.extract_strided_slice %8 {offsets = [0, 64], sizes = [16, 32], strides = [1, 1]} : vector<16x96xf32> to vector<16x32xf32>
    %12 = vector.extract_strided_slice %9 {offsets = [0, 0], sizes = [8, 32], strides = [1, 1]} : vector<16x32xf32> to vector<8x32xf32>
    %13 = vector.extract_strided_slice %10 {offsets = [0, 0], sizes = [8, 32], strides = [1, 1]} : vector<16x32xf32> to vector<8x32xf32>
    %14 = vector.extract_strided_slice %11 {offsets = [0, 0], sizes = [8, 32], strides = [1, 1]} : vector<16x32xf32> to vector<8x32xf32>
    %15 = vector.extract_strided_slice %12 {offsets = [0, 0], sizes = [8, 8], strides = [1, 1]} : vector<8x32xf32> to vector<8x8xf32>
    %16 = vector.extract_strided_slice %13 {offsets = [0, 0], sizes = [8, 8], strides = [1, 1]} : vector<8x32xf32> to vector<8x8xf32>
    %17 = vector.extract_strided_slice %14 {offsets = [0, 0], sizes = [8, 8], strides = [1, 1]} : vector<8x32xf32> to vector<8x8xf32>
    %cst_11 = arith.constant dense<0.000000e+00> : vector<8x8xf32>
    %18 = tpu.matmul %15, %16, %cst_11 {dimension_numbers = #tpu.dot_dimension_numbers<[1], [1], [0], [0], [0, 0, 1, 0], [], []>} : vector<8x8xf32>, vector<8x8xf32>, vector<8x8xf32> -> vector<8x8xf32>
    %cst_12 = arith.constant 0.353553385 : f32
    %19 = vector.broadcast %cst_12 : f32 to vector<8x8xf32>
    %20 = arith.mulf %18, %19 : vector<8x8xf32>
    %cst_13 = arith.constant dense<0xFF800000> : vector<8xf32>
    %21 = vector.multi_reduction <maximumf>, %20, %cst_13 [1] : vector<8x8xf32> to vector<8xf32>
    %22 = vector.shape_cast %21 : vector<8xf32> to vector<8x1xf32>
    %23 = vector.broadcast %22 : vector<8x1xf32> to vector<8x8xf32>
    %24 = arith.subf %20, %23 : vector<8x8xf32>
    %25 = math.exp %24 : vector<8x8xf32>
    %cst_14 = arith.constant dense<0.000000e+00> : vector<8xf32>
    %26 = vector.multi_reduction <add>, %25, %cst_14 [1] : vector<8x8xf32> to vector<8xf32>
    %27 = vector.shape_cast %26 : vector<8xf32> to vector<8x1xf32>
    %28 = tpu.reciprocal %27 {approx = true} : vector<8x1xf32> -> vector<8x1xf32>
    %29 = vector.broadcast %28 : vector<8x1xf32> to vector<8x8xf32>
    %30 = arith.mulf %25, %29 : vector<8x8xf32>
    %cst_15 = arith.constant dense<0.000000e+00> : vector<8x8xf32>
    %31 = tpu.matmul %30, %17, %cst_15 {dimension_numbers = #tpu.dot_dimension_numbers<[1], [0], [0], [1], [0, 0, 1, 1], [], []>} : vector<8x8xf32>, vector<8x8xf32>, vector<8x8xf32> -> vector<8x8xf32>
    %32 = vector.extract_strided_slice %4 {offsets = [0, 0], sizes = [8, 32], strides = [1, 1]} : vector<32x32xf32> to vector<8x32xf32>
    %cst_16 = arith.constant dense<0.000000e+00> : vector<8x32xf32>
    %33 = tpu.matmul %31, %32, %cst_16 {dimension_numbers = #tpu.dot_dimension_numbers<[1], [0], [0], [1], [0, 0, 1, 1], [], []>} : vector<8x8xf32>, vector<8x32xf32>, vector<8x32xf32> -> vector<8x32xf32>
    %34 = vector.extract_strided_slice %12 {offsets = [0, 8], sizes = [8, 8], strides = [1, 1]} : vector<8x32xf32> to vector<8x8xf32>
    %35 = vector.extract_strided_slice %13 {offsets = [0, 8], sizes = [8, 8], strides = [1, 1]} : vector<8x32xf32> to vector<8x8xf32>
    %36 = vector.extract_strided_slice %14 {offsets = [0, 8], sizes = [8, 8], strides = [1, 1]} : vector<8x32xf32> to vector<8x8xf32>
    %cst_17 = arith.constant dense<0.000000e+00> : vector<8x8xf32>
    %37 = tpu.matmul %34, %35, %cst_17 {dimension_numbers = #tpu.dot_dimension_numbers<[1], [1], [0], [0], [0, 0, 1, 0], [], []>} : vector<8x8xf32>, vector<8x8xf32>, vector<8x8xf32> -> vector<8x8xf32>
    %cst_18 = arith.constant 0.353553385 : f32
    %38 = vector.broadcast %cst_18 : f32 to vector<8x8xf32>
    %39 = arith.mulf %37, %38 : vector<8x8xf32>
    %cst_19 = arith.constant dense<0xFF800000> : vector<8xf32>
    %40 = vector.multi_reduction <maximumf>, %39, %cst_19 [1] : vector<8x8xf32> to vector<8xf32>
    %41 = vector.shape_cast %40 : vector<8xf32> to vector<8x1xf32>
    %42 = vector.broadcast %41 : vector<8x1xf32> to vector<8x8xf32>
    %43 = arith.subf %39, %42 : vector<8x8xf32>
    %44 = math.exp %43 : vector<8x8xf32>
    %cst_20 = arith.constant dense<0.000000e+00> : vector<8xf32>
    %45 = vector.multi_reduction <add>, %44, %cst_20 [1] : vector<8x8xf32> to vector<8xf32>
    %46 = vector.shape_cast %45 : vector<8xf32> to vector<8x1xf32>
    %47 = tpu.reciprocal %46 {approx = true} : vector<8x1xf32> -> vector<8x1xf32>
    %48 = vector.broadcast %47 : vector<8x1xf32> to vector<8x8xf32>
    %49 = arith.mulf %44, %48 : vector<8x8xf32>
    %cst_21 = arith.constant dense<0.000000e+00> : vector<8x8xf32>
    %50 = tpu.matmul %49, %36, %cst_21 {dimension_numbers = #tpu.dot_dimension_numbers<[1], [0], [0], [1], [0, 0, 1, 1], [], []>} : vector<8x8xf32>, vector<8x8xf32>, vector<8x8xf32> -> vector<8x8xf32>
    %51 = vector.extract_strided_slice %4 {offsets = [8, 0], sizes = [8, 32], strides = [1, 1]} : vector<32x32xf32> to vector<8x32xf32>
    %cst_22 = arith.constant dense<0.000000e+00> : vector<8x32xf32>
    %52 = tpu.matmul %50, %51, %cst_22 {dimension_numbers = #tpu.dot_dimension_numbers<[1], [0], [0], [1], [0, 0, 1, 1], [], []>} : vector<8x8xf32>, vector<8x32xf32>, vector<8x32xf32> -> vector<8x32xf32>
    %53 = arith.addf %33, %52 : vector<8x32xf32>
    %54 = vector.extract_strided_slice %12 {offsets = [0, 16], sizes = [8, 8], strides = [1, 1]} : vector<8x32xf32> to vector<8x8xf32>
    %55 = vector.extract_strided_slice %13 {offsets = [0, 16], sizes = [8, 8], strides = [1, 1]} : vector<8x32xf32> to vector<8x8xf32>
    %56 = vector.extract_strided_slice %14 {offsets = [0, 16], sizes = [8, 8], strides = [1, 1]} : vector<8x32xf32> to vector<8x8xf32>
    %cst_23 = arith.constant dense<0.000000e+00> : vector<8x8xf32>
    %57 = tpu.matmul %54, %55, %cst_23 {dimension_numbers = #tpu.dot_dimension_numbers<[1], [1], [0], [0], [0, 0, 1, 0], [], []>} : vector<8x8xf32>, vector<8x8xf32>, vector<8x8xf32> -> vector<8x8xf32>
    %cst_24 = arith.constant 0.353553385 : f32
    %58 = vector.broadcast %cst_24 : f32 to vector<8x8xf32>
    %59 = arith.mulf %57, %58 : vector<8x8xf32>
    %cst_25 = arith.constant dense<0xFF800000> : vector<8xf32>
    %60 = vector.multi_reduction <maximumf>, %59, %cst_25 [1] : vector<8x8xf32> to vector<8xf32>
    %61 = vector.shape_cast %60 : vector<8xf32> to vector<8x1xf32>
    %62 = vector.broadcast %61 : vector<8x1xf32> to vector<8x8xf32>
    %63 = arith.subf %59, %62 : vector<8x8xf32>
    %64 = math.exp %63 : vector<8x8xf32>
    %cst_26 = arith.constant dense<0.000000e+00> : vector<8xf32>
    %65 = vector.multi_reduction <add>, %64, %cst_26 [1] : vector<8x8xf32> to vector<8xf32>
    %66 = vector.shape_cast %65 : vector<8xf32> to vector<8x1xf32>
    %67 = tpu.reciprocal %66 {approx = true} : vector<8x1xf32> -> vector<8x1xf32>
    %68 = vector.broadcast %67 : vector<8x1xf32> to vector<8x8xf32>
    %69 = arith.mulf %64, %68 : vector<8x8xf32>
    %cst_27 = arith.constant dense<0.000000e+00> : vector<8x8xf32>
    %70 = tpu.matmul %69, %56, %cst_27 {dimension_numbers = #tpu.dot_dimension_numbers<[1], [0], [0], [1], [0, 0, 1, 1], [], []>} : vector<8x8xf32>, vector<8x8xf32>, vector<8x8xf32> -> vector<8x8xf32>
    %71 = vector.extract_strided_slice %4 {offsets = [16, 0], sizes = [8, 32], strides = [1, 1]} : vector<32x32xf32> to vector<8x32xf32>
    %cst_28 = arith.constant dense<0.000000e+00> : vector<8x32xf32>
    %72 = tpu.matmul %70, %71, %cst_28 {dimension_numbers = #tpu.dot_dimension_numbers<[1], [0], [0], [1], [0, 0, 1, 1], [], []>} : vector<8x8xf32>, vector<8x32xf32>, vector<8x32xf32> -> vector<8x32xf32>
    %73 = arith.addf %53, %72 : vector<8x32xf32>
    %74 = vector.extract_strided_slice %12 {offsets = [0, 24], sizes = [8, 8], strides = [1, 1]} : vector<8x32xf32> to vector<8x8xf32>
    %75 = vector.extract_strided_slice %13 {offsets = [0, 24], sizes = [8, 8], strides = [1, 1]} : vector<8x32xf32> to vector<8x8xf32>
    %76 = vector.extract_strided_slice %14 {offsets = [0, 24], sizes = [8, 8], strides = [1, 1]} : vector<8x32xf32> to vector<8x8xf32>
    %cst_29 = arith.constant dense<0.000000e+00> : vector<8x8xf32>
    %77 = tpu.matmul %74, %75, %cst_29 {dimension_numbers = #tpu.dot_dimension_numbers<[1], [1], [0], [0], [0, 0, 1, 0], [], []>} : vector<8x8xf32>, vector<8x8xf32>, vector<8x8xf32> -> vector<8x8xf32>
    %cst_30 = arith.constant 0.353553385 : f32
    %78 = vector.broadcast %cst_30 : f32 to vector<8x8xf32>
    %79 = arith.mulf %77, %78 : vector<8x8xf32>
    %cst_31 = arith.constant dense<0xFF800000> : vector<8xf32>
    %80 = vector.multi_reduction <maximumf>, %79, %cst_31 [1] : vector<8x8xf32> to vector<8xf32>
    %81 = vector.shape_cast %80 : vector<8xf32> to vector<8x1xf32>
    %82 = vector.broadcast %81 : vector<8x1xf32> to vector<8x8xf32>
    %83 = arith.subf %79, %82 : vector<8x8xf32>
    %84 = math.exp %83 : vector<8x8xf32>
    %cst_32 = arith.constant dense<0.000000e+00> : vector<8xf32>
    %85 = vector.multi_reduction <add>, %84, %cst_32 [1] : vector<8x8xf32> to vector<8xf32>
    %86 = vector.shape_cast %85 : vector<8xf32> to vector<8x1xf32>
    %87 = tpu.reciprocal %86 {approx = true} : vector<8x1xf32> -> vector<8x1xf32>
    %88 = vector.broadcast %87 : vector<8x1xf32> to vector<8x8xf32>
    %89 = arith.mulf %84, %88 : vector<8x8xf32>
    %cst_33 = arith.constant dense<0.000000e+00> : vector<8x8xf32>
    %90 = tpu.matmul %89, %76, %cst_33 {dimension_numbers = #tpu.dot_dimension_numbers<[1], [0], [0], [1], [0, 0, 1, 1], [], []>} : vector<8x8xf32>, vector<8x8xf32>, vector<8x8xf32> -> vector<8x8xf32>
    %91 = vector.extract_strided_slice %4 {offsets = [24, 0], sizes = [8, 32], strides = [1, 1]} : vector<32x32xf32> to vector<8x32xf32>
    %cst_34 = arith.constant dense<0.000000e+00> : vector<8x32xf32>
    %92 = tpu.matmul %90, %91, %cst_34 {dimension_numbers = #tpu.dot_dimension_numbers<[1], [0], [0], [1], [0, 0, 1, 1], [], []>} : vector<8x8xf32>, vector<8x32xf32>, vector<8x32xf32> -> vector<8x32xf32>
    %93 = arith.addf %73, %92 : vector<8x32xf32>
    %94 = vector.broadcast %5 : vector<1x32xf32> to vector<8x32xf32>
    %95 = arith.addf %93, %94 : vector<8x32xf32>
    %96 = vector.extract_strided_slice %9 {offsets = [8, 0], sizes = [8, 32], strides = [1, 1]} : vector<16x32xf32> to vector<8x32xf32>
    %97 = vector.extract_strided_slice %10 {offsets = [8, 0], sizes = [8, 32], strides = [1, 1]} : vector<16x32xf32> to vector<8x32xf32>
    %98 = vector.extract_strided_slice %11 {offsets = [8, 0], sizes = [8, 32], strides = [1, 1]} : vector<16x32xf32> to vector<8x32xf32>
    %99 = vector.extract_strided_slice %96 {offsets = [0, 0], sizes = [8, 8], strides = [1, 1]} : vector<8x32xf32> to vector<8x8xf32>
    %100 = vector.extract_strided_slice %97 {offsets = [0, 0], sizes = [8, 8], strides = [1, 1]} : vector<8x32xf32> to vector<8x8xf32>
    %101 = vector.extract_strided_slice %98 {offsets = [0, 0], sizes = [8, 8], strides = [1, 1]} : vector<8x32xf32> to vector<8x8xf32>
    %cst_35 = arith.constant dense<0.000000e+00> : vector<8x8xf32>
    %102 = tpu.matmul %99, %100, %cst_35 {dimension_numbers = #tpu.dot_dimension_numbers<[1], [1], [0], [0], [0, 0, 1, 0], [], []>} : vector<8x8xf32>, vector<8x8xf32>, vector<8x8xf32> -> vector<8x8xf32>
    %cst_36 = arith.constant 0.353553385 : f32
    %103 = vector.broadcast %cst_36 : f32 to vector<8x8xf32>
    %104 = arith.mulf %102, %103 : vector<8x8xf32>
    %cst_37 = arith.constant dense<0xFF800000> : vector<8xf32>
    %105 = vector.multi_reduction <maximumf>, %104, %cst_37 [1] : vector<8x8xf32> to vector<8xf32>
    %106 = vector.shape_cast %105 : vector<8xf32> to vector<8x1xf32>
    %107 = vector.broadcast %106 : vector<8x1xf32> to vector<8x8xf32>
    %108 = arith.subf %104, %107 : vector<8x8xf32>
    %109 = math.exp %108 : vector<8x8xf32>
    %cst_38 = arith.constant dense<0.000000e+00> : vector<8xf32>
    %110 = vector.multi_reduction <add>, %109, %cst_38 [1] : vector<8x8xf32> to vector<8xf32>
    %111 = vector.shape_cast %110 : vector<8xf32> to vector<8x1xf32>
    %112 = tpu.reciprocal %111 {approx = true} : vector<8x1xf32> -> vector<8x1xf32>
    %113 = vector.broadcast %112 : vector<8x1xf32> to vector<8x8xf32>
    %114 = arith.mulf %109, %113 : vector<8x8xf32>
    %cst_39 = arith.constant dense<0.000000e+00> : vector<8x8xf32>
    %115 = tpu.matmul %114, %101, %cst_39 {dimension_numbers = #tpu.dot_dimension_numbers<[1], [0], [0], [1], [0, 0, 1, 1], [], []>} : vector<8x8xf32>, vector<8x8xf32>, vector<8x8xf32> -> vector<8x8xf32>
    %116 = vector.extract_strided_slice %4 {offsets = [0, 0], sizes = [8, 32], strides = [1, 1]} : vector<32x32xf32> to vector<8x32xf32>
    %cst_40 = arith.constant dense<0.000000e+00> : vector<8x32xf32>
    %117 = tpu.matmul %115, %116, %cst_40 {dimension_numbers = #tpu.dot_dimension_numbers<[1], [0], [0], [1], [0, 0, 1, 1], [], []>} : vector<8x8xf32>, vector<8x32xf32>, vector<8x32xf32> -> vector<8x32xf32>
    %118 = vector.extract_strided_slice %96 {offsets = [0, 8], sizes = [8, 8], strides = [1, 1]} : vector<8x32xf32> to vector<8x8xf32>
    %119 = vector.extract_strided_slice %97 {offsets = [0, 8], sizes = [8, 8], strides = [1, 1]} : vector<8x32xf32> to vector<8x8xf32>
    %120 = vector.extract_strided_slice %98 {offsets = [0, 8], sizes = [8, 8], strides = [1, 1]} : vector<8x32xf32> to vector<8x8xf32>
    %cst_41 = arith.constant dense<0.000000e+00> : vector<8x8xf32>
    %121 = tpu.matmul %118, %119, %cst_41 {dimension_numbers = #tpu.dot_dimension_numbers<[1], [1], [0], [0], [0, 0, 1, 0], [], []>} : vector<8x8xf32>, vector<8x8xf32>, vector<8x8xf32> -> vector<8x8xf32>
    %cst_42 = arith.constant 0.353553385 : f32
    %122 = vector.broadcast %cst_42 : f32 to vector<8x8xf32>
    %123 = arith.mulf %121, %122 : vector<8x8xf32>
    %cst_43 = arith.constant dense<0xFF800000> : vector<8xf32>
    %124 = vector.multi_reduction <maximumf>, %123, %cst_43 [1] : vector<8x8xf32> to vector<8xf32>
    %125 = vector.shape_cast %124 : vector<8xf32> to vector<8x1xf32>
    %126 = vector.broadcast %125 : vector<8x1xf32> to vector<8x8xf32>
    %127 = arith.subf %123, %126 : vector<8x8xf32>
    %128 = math.exp %127 : vector<8x8xf32>
    %cst_44 = arith.constant dense<0.000000e+00> : vector<8xf32>
    %129 = vector.multi_reduction <add>, %128, %cst_44 [1] : vector<8x8xf32> to vector<8xf32>
    %130 = vector.shape_cast %129 : vector<8xf32> to vector<8x1xf32>
    %131 = tpu.reciprocal %130 {approx = true} : vector<8x1xf32> -> vector<8x1xf32>
    %132 = vector.broadcast %131 : vector<8x1xf32> to vector<8x8xf32>
    %133 = arith.mulf %128, %132 : vector<8x8xf32>
    %cst_45 = arith.constant dense<0.000000e+00> : vector<8x8xf32>
    %134 = tpu.matmul %133, %120, %cst_45 {dimension_numbers = #tpu.dot_dimension_numbers<[1], [0], [0], [1], [0, 0, 1, 1], [], []>} : vector<8x8xf32>, vector<8x8xf32>, vector<8x8xf32> -> vector<8x8xf32>
    %135 = vector.extract_strided_slice %4 {offsets = [8, 0], sizes = [8, 32], strides = [1, 1]} : vector<32x32xf32> to vector<8x32xf32>
    %cst_46 = arith.constant dense<0.000000e+00> : vector<8x32xf32>
    %136 = tpu.matmul %134, %135, %cst_46 {dimension_numbers = #tpu.dot_dimension_numbers<[1], [0], [0], [1], [0, 0, 1, 1], [], []>} : vector<8x8xf32>, vector<8x32xf32>, vector<8x32xf32> -> vector<8x32xf32>
    %137 = arith.addf %117, %136 : vector<8x32xf32>
    %138 = vector.extract_strided_slice %96 {offsets = [0, 16], sizes = [8, 8], strides = [1, 1]} : vector<8x32xf32> to vector<8x8xf32>
    %139 = vector.extract_strided_slice %97 {offsets = [0, 16], sizes = [8, 8], strides = [1, 1]} : vector<8x32xf32> to vector<8x8xf32>
    %140 = vector.extract_strided_slice %98 {offsets = [0, 16], sizes = [8, 8], strides = [1, 1]} : vector<8x32xf32> to vector<8x8xf32>
    %cst_47 = arith.constant dense<0.000000e+00> : vector<8x8xf32>
    %141 = tpu.matmul %138, %139, %cst_47 {dimension_numbers = #tpu.dot_dimension_numbers<[1], [1], [0], [0], [0, 0, 1, 0], [], []>} : vector<8x8xf32>, vector<8x8xf32>, vector<8x8xf32> -> vector<8x8xf32>
    %cst_48 = arith.constant 0.353553385 : f32
    %142 = vector.broadcast %cst_48 : f32 to vector<8x8xf32>
    %143 = arith.mulf %141, %142 : vector<8x8xf32>
    %cst_49 = arith.constant dense<0xFF800000> : vector<8xf32>
    %144 = vector.multi_reduction <maximumf>, %143, %cst_49 [1] : vector<8x8xf32> to vector<8xf32>
    %145 = vector.shape_cast %144 : vector<8xf32> to vector<8x1xf32>
    %146 = vector.broadcast %145 : vector<8x1xf32> to vector<8x8xf32>
    %147 = arith.subf %143, %146 : vector<8x8xf32>
    %148 = math.exp %147 : vector<8x8xf32>
    %cst_50 = arith.constant dense<0.000000e+00> : vector<8xf32>
    %149 = vector.multi_reduction <add>, %148, %cst_50 [1] : vector<8x8xf32> to vector<8xf32>
    %150 = vector.shape_cast %149 : vector<8xf32> to vector<8x1xf32>
    %151 = tpu.reciprocal %150 {approx = true} : vector<8x1xf32> -> vector<8x1xf32>
    %152 = vector.broadcast %151 : vector<8x1xf32> to vector<8x8xf32>
    %153 = arith.mulf %148, %152 : vector<8x8xf32>
    %cst_51 = arith.constant dense<0.000000e+00> : vector<8x8xf32>
    %154 = tpu.matmul %153, %140, %cst_51 {dimension_numbers = #tpu.dot_dimension_numbers<[1], [0], [0], [1], [0, 0, 1, 1], [], []>} : vector<8x8xf32>, vector<8x8xf32>, vector<8x8xf32> -> vector<8x8xf32>
    %155 = vector.extract_strided_slice %4 {offsets = [16, 0], sizes = [8, 32], strides = [1, 1]} : vector<32x32xf32> to vector<8x32xf32>
    %cst_52 = arith.constant dense<0.000000e+00> : vector<8x32xf32>
    %156 = tpu.matmul %154, %155, %cst_52 {dimension_numbers = #tpu.dot_dimension_numbers<[1], [0], [0], [1], [0, 0, 1, 1], [], []>} : vector<8x8xf32>, vector<8x32xf32>, vector<8x32xf32> -> vector<8x32xf32>
    %157 = arith.addf %137, %156 : vector<8x32xf32>
    %158 = vector.extract_strided_slice %96 {offsets = [0, 24], sizes = [8, 8], strides = [1, 1]} : vector<8x32xf32> to vector<8x8xf32>
    %159 = vector.extract_strided_slice %97 {offsets = [0, 24], sizes = [8, 8], strides = [1, 1]} : vector<8x32xf32> to vector<8x8xf32>
    %160 = vector.extract_strided_slice %98 {offsets = [0, 24], sizes = [8, 8], strides = [1, 1]} : vector<8x32xf32> to vector<8x8xf32>
    %cst_53 = arith.constant dense<0.000000e+00> : vector<8x8xf32>
    %161 = tpu.matmul %158, %159, %cst_53 {dimension_numbers = #tpu.dot_dimension_numbers<[1], [1], [0], [0], [0, 0, 1, 0], [], []>} : vector<8x8xf32>, vector<8x8xf32>, vector<8x8xf32> -> vector<8x8xf32>
    %cst_54 = arith.constant 0.353553385 : f32
    %162 = vector.broadcast %cst_54 : f32 to vector<8x8xf32>
    %163 = arith.mulf %161, %162 : vector<8x8xf32>
    %cst_55 = arith.constant dense<0xFF800000> : vector<8xf32>
    %164 = vector.multi_reduction <maximumf>, %163, %cst_55 [1] : vector<8x8xf32> to vector<8xf32>
    %165 = vector.shape_cast %164 : vector<8xf32> to vector<8x1xf32>
    %166 = vector.broadcast %165 : vector<8x1xf32> to vector<8x8xf32>
    %167 = arith.subf %163, %166 : vector<8x8xf32>
    %168 = math.exp %167 : vector<8x8xf32>
    %cst_56 = arith.constant dense<0.000000e+00> : vector<8xf32>
    %169 = vector.multi_reduction <add>, %168, %cst_56 [1] : vector<8x8xf32> to vector<8xf32>
    %170 = vector.shape_cast %169 : vector<8xf32> to vector<8x1xf32>
    %171 = tpu.reciprocal %170 {approx = true} : vector<8x1xf32> -> vector<8x1xf32>
    %172 = vector.broadcast %171 : vector<8x1xf32> to vector<8x8xf32>
    %173 = arith.mulf %168, %172 : vector<8x8xf32>
    %cst_57 = arith.constant dense<0.000000e+00> : vector<8x8xf32>
    %174 = tpu.matmul %173, %160, %cst_57 {dimension_numbers = #tpu.dot_dimension_numbers<[1], [0], [0], [1], [0, 0, 1, 1], [], []>} : vector<8x8xf32>, vector<8x8xf32>, vector<8x8xf32> -> vector<8x8xf32>
    %175 = vector.extract_strided_slice %4 {offsets = [24, 0], sizes = [8, 32], strides = [1, 1]} : vector<32x32xf32> to vector<8x32xf32>
    %cst_58 = arith.constant dense<0.000000e+00> : vector<8x32xf32>
    %176 = tpu.matmul %174, %175, %cst_58 {dimension_numbers = #tpu.dot_dimension_numbers<[1], [0], [0], [1], [0, 0, 1, 1], [], []>} : vector<8x8xf32>, vector<8x32xf32>, vector<8x32xf32> -> vector<8x32xf32>
    %177 = arith.addf %157, %176 : vector<8x32xf32>
    %178 = vector.broadcast %5 : vector<1x32xf32> to vector<8x32xf32>
    %179 = arith.addf %177, %178 : vector<8x32xf32>
    %180 = tpu.concatenate %95, %179 in 0 : vector<8x32xf32>, vector<8x32xf32> -> vector<16x32xf32>
    %c0_59 = arith.constant 0 : index
    %c0_60 = arith.constant 0 : index
    %181 = vector.load %arg10[%c0_59, %c0_60] : memref<1x32xf32, #tpu.memory_space<vmem>>, vector<1x32xf32>
    %c0_61 = arith.constant 0 : index
    %c0_62 = arith.constant 0 : index
    %182 = vector.load %arg11[%c0_61, %c0_62] : memref<1x32xf32, #tpu.memory_space<vmem>>, vector<1x32xf32>
    %183 = arith.addf %0, %180 : vector<16x32xf32>
    %cst_63 = arith.constant dense<0.000000e+00> : vector<16xf32>
    %184 = vector.multi_reduction <add>, %183, %cst_63 [1] : vector<16x32xf32> to vector<16xf32>
    %185 = vector.shape_cast %184 : vector<16xf32> to vector<16x1xf32>
    %cst_64 = arith.constant 3.200000e+01 : f32
    %186 = vector.broadcast %cst_64 : f32 to vector<16x1xf32>
    %187 = arith.divf %185, %186 : vector<16x1xf32>
    %188 = vector.broadcast %187 : vector<16x1xf32> to vector<16x32xf32>
    %189 = arith.subf %183, %188 : vector<16x32xf32>
    %190 = arith.mulf %189, %189 : vector<16x32xf32>
    %cst_65 = arith.constant dense<0.000000e+00> : vector<16xf32>
    %191 = vector.multi_reduction <add>, %190, %cst_65 [1] : vector<16x32xf32> to vector<16xf32>
    %192 = vector.shape_cast %191 : vector<16xf32> to vector<16x1xf32>
    %cst_66 = arith.constant 3.200000e+01 : f32
    %193 = vector.broadcast %cst_66 : f32 to vector<16x1xf32>
    %194 = arith.divf %192, %193 : vector<16x1xf32>
    %cst_67 = arith.constant 9.99999974E-6 : f32
    %195 = vector.broadcast %cst_67 : f32 to vector<16x1xf32>
    %196 = arith.addf %194, %195 : vector<16x1xf32>
    %197 = math.rsqrt %196 : vector<16x1xf32>
    %198 = vector.broadcast %197 : vector<16x1xf32> to vector<16x32xf32>
    %199 = arith.mulf %189, %198 : vector<16x32xf32>
    %200 = vector.broadcast %181 : vector<1x32xf32> to vector<16x32xf32>
    %201 = arith.mulf %199, %200 : vector<16x32xf32>
    %202 = vector.broadcast %182 : vector<1x32xf32> to vector<16x32xf32>
    %203 = arith.addf %201, %202 : vector<16x32xf32>
    %c0_68 = arith.constant 0 : index
    %c0_69 = arith.constant 0 : index
    %204 = vector.load %arg6[%c0_68, %c0_69] : memref<32x96xf32, #tpu.memory_space<vmem>>, vector<32x96xf32>
    %c0_70 = arith.constant 0 : index
    %c0_71 = arith.constant 0 : index
    %205 = vector.load %arg7[%c0_70, %c0_71] : memref<1x96xf32, #tpu.memory_space<vmem>>, vector<1x96xf32>
    %c0_72 = arith.constant 0 : index
    %c0_73 = arith.constant 0 : index
    %206 = vector.load %arg8[%c0_72, %c0_73] : memref<32x32xf32, #tpu.memory_space<vmem>>, vector<32x32xf32>
    %c0_74 = arith.constant 0 : index
    %c0_75 = arith.constant 0 : index
    %207 = vector.load %arg9[%c0_74, %c0_75] : memref<1x32xf32, #tpu.memory_space<vmem>>, vector<1x32xf32>
    %208 = vector.extract_strided_slice %204 {offsets = [0, 0], sizes = [32, 32], strides = [1, 1]} : vector<32x96xf32> to vector<32x32xf32>
    %cst_76 = arith.constant dense<0.000000e+00> : vector<16x32xf32>
    %209 = tpu.matmul %203, %208, %cst_76 {dimension_numbers = #tpu.dot_dimension_numbers<[1], [0], [0], [1], [0, 0, 1, 1], [], []>} : vector<16x32xf32>, vector<32x32xf32>, vector<16x32xf32> -> vector<16x32xf32>
    %210 = vector.extract_strided_slice %205 {offsets = [0, 0], sizes = [1, 32], strides = [1, 1]} : vector<1x96xf32> to vector<1x32xf32>
    %211 = vector.broadcast %210 : vector<1x32xf32> to vector<16x32xf32>
    %212 = arith.addf %209, %211 : vector<16x32xf32>
    %213 = vector.extract_strided_slice %204 {offsets = [0, 32], sizes = [32, 64], strides = [1, 1]} : vector<32x96xf32> to vector<32x64xf32>
    %cst_77 = arith.constant dense<0.000000e+00> : vector<20x64xf32>
    %214 = tpu.matmul %1, %213, %cst_77 {dimension_numbers = #tpu.dot_dimension_numbers<[1], [0], [0], [1], [0, 0, 1, 1], [], []>} : vector<20x32xf32>, vector<32x64xf32>, vector<20x64xf32> -> vector<20x64xf32>
    %215 = vector.extract_strided_slice %205 {offsets = [0, 32], sizes = [1, 64], strides = [1, 1]} : vector<1x96xf32> to vector<1x64xf32>
    %216 = vector.broadcast %215 : vector<1x64xf32> to vector<20x64xf32>
    %217 = arith.addf %214, %216 : vector<20x64xf32>
    %218 = vector.extract_strided_slice %217 {offsets = [0, 0], sizes = [20, 32], strides = [1, 1]} : vector<20x64xf32> to vector<20x32xf32>
    %219 = vector.extract_strided_slice %217 {offsets = [0, 32], sizes = [20, 32], strides = [1, 1]} : vector<20x64xf32> to vector<20x32xf32>
    %220 = vector.extract_strided_slice %212 {offsets = [0, 0], sizes = [8, 32], strides = [1, 1]} : vector<16x32xf32> to vector<8x32xf32>
    %221 = vector.extract_strided_slice %218 {offsets = [0, 0], sizes = [10, 32], strides = [1, 1]} : vector<20x32xf32> to vector<10x32xf32>
    %222 = vector.extract_strided_slice %219 {offsets = [0, 0], sizes = [10, 32], strides = [1, 1]} : vector<20x32xf32> to vector<10x32xf32>
    %223 = vector.extract_strided_slice %220 {offsets = [0, 0], sizes = [8, 8], strides = [1, 1]} : vector<8x32xf32> to vector<8x8xf32>
    %224 = vector.extract_strided_slice %221 {offsets = [0, 0], sizes = [10, 8], strides = [1, 1]} : vector<10x32xf32> to vector<10x8xf32>
    %225 = vector.extract_strided_slice %222 {offsets = [0, 0], sizes = [10, 8], strides = [1, 1]} : vector<10x32xf32> to vector<10x8xf32>
    %cst_78 = arith.constant dense<0.000000e+00> : vector<8x10xf32>
    %226 = tpu.matmul %223, %224, %cst_78 {dimension_numbers = #tpu.dot_dimension_numbers<[1], [1], [0], [0], [0, 0, 1, 0], [], []>} : vector<8x8xf32>, vector<10x8xf32>, vector<8x10xf32> -> vector<8x10xf32>
    %cst_79 = arith.constant 0.353553385 : f32
    %227 = vector.broadcast %cst_79 : f32 to vector<8x10xf32>
    %228 = arith.mulf %226, %227 : vector<8x10xf32>
    %cst_80 = arith.constant dense<0xFF800000> : vector<8xf32>
    %229 = vector.multi_reduction <maximumf>, %228, %cst_80 [1] : vector<8x10xf32> to vector<8xf32>
    %230 = vector.shape_cast %229 : vector<8xf32> to vector<8x1xf32>
    %231 = vector.broadcast %230 : vector<8x1xf32> to vector<8x10xf32>
    %232 = arith.subf %228, %231 : vector<8x10xf32>
    %233 = math.exp %232 : vector<8x10xf32>
    %cst_81 = arith.constant dense<0.000000e+00> : vector<8xf32>
    %234 = vector.multi_reduction <add>, %233, %cst_81 [1] : vector<8x10xf32> to vector<8xf32>
    %235 = vector.shape_cast %234 : vector<8xf32> to vector<8x1xf32>
    %236 = tpu.reciprocal %235 {approx = true} : vector<8x1xf32> -> vector<8x1xf32>
    %237 = vector.broadcast %236 : vector<8x1xf32> to vector<8x10xf32>
    %238 = arith.mulf %233, %237 : vector<8x10xf32>
    %cst_82 = arith.constant dense<0.000000e+00> : vector<8x8xf32>
    %239 = tpu.matmul %238, %225, %cst_82 {dimension_numbers = #tpu.dot_dimension_numbers<[1], [0], [0], [1], [0, 0, 1, 1], [], []>} : vector<8x10xf32>, vector<10x8xf32>, vector<8x8xf32> -> vector<8x8xf32>
    %240 = vector.extract_strided_slice %206 {offsets = [0, 0], sizes = [8, 32], strides = [1, 1]} : vector<32x32xf32> to vector<8x32xf32>
    %cst_83 = arith.constant dense<0.000000e+00> : vector<8x32xf32>
    %241 = tpu.matmul %239, %240, %cst_83 {dimension_numbers = #tpu.dot_dimension_numbers<[1], [0], [0], [1], [0, 0, 1, 1], [], []>} : vector<8x8xf32>, vector<8x32xf32>, vector<8x32xf32> -> vector<8x32xf32>
    %242 = vector.extract_strided_slice %220 {offsets = [0, 8], sizes = [8, 8], strides = [1, 1]} : vector<8x32xf32> to vector<8x8xf32>
    %243 = vector.extract_strided_slice %221 {offsets = [0, 8], sizes = [10, 8], strides = [1, 1]} : vector<10x32xf32> to vector<10x8xf32>
    %244 = vector.extract_strided_slice %222 {offsets = [0, 8], sizes = [10, 8], strides = [1, 1]} : vector<10x32xf32> to vector<10x8xf32>
    %cst_84 = arith.constant dense<0.000000e+00> : vector<8x10xf32>
    %245 = tpu.matmul %242, %243, %cst_84 {dimension_numbers = #tpu.dot_dimension_numbers<[1], [1], [0], [0], [0, 0, 1, 0], [], []>} : vector<8x8xf32>, vector<10x8xf32>, vector<8x10xf32> -> vector<8x10xf32>
    %cst_85 = arith.constant 0.353553385 : f32
    %246 = vector.broadcast %cst_85 : f32 to vector<8x10xf32>
    %247 = arith.mulf %245, %246 : vector<8x10xf32>
    %cst_86 = arith.constant dense<0xFF800000> : vector<8xf32>
    %248 = vector.multi_reduction <maximumf>, %247, %cst_86 [1] : vector<8x10xf32> to vector<8xf32>
    %249 = vector.shape_cast %248 : vector<8xf32> to vector<8x1xf32>
    %250 = vector.broadcast %249 : vector<8x1xf32> to vector<8x10xf32>
    %251 = arith.subf %247, %250 : vector<8x10xf32>
    %252 = math.exp %251 : vector<8x10xf32>
    %cst_87 = arith.constant dense<0.000000e+00> : vector<8xf32>
    %253 = vector.multi_reduction <add>, %252, %cst_87 [1] : vector<8x10xf32> to vector<8xf32>
    %254 = vector.shape_cast %253 : vector<8xf32> to vector<8x1xf32>
    %255 = tpu.reciprocal %254 {approx = true} : vector<8x1xf32> -> vector<8x1xf32>
    %256 = vector.broadcast %255 : vector<8x1xf32> to vector<8x10xf32>
    %257 = arith.mulf %252, %256 : vector<8x10xf32>
    %cst_88 = arith.constant dense<0.000000e+00> : vector<8x8xf32>
    %258 = tpu.matmul %257, %244, %cst_88 {dimension_numbers = #tpu.dot_dimension_numbers<[1], [0], [0], [1], [0, 0, 1, 1], [], []>} : vector<8x10xf32>, vector<10x8xf32>, vector<8x8xf32> -> vector<8x8xf32>
    %259 = vector.extract_strided_slice %206 {offsets = [8, 0], sizes = [8, 32], strides = [1, 1]} : vector<32x32xf32> to vector<8x32xf32>
    %cst_89 = arith.constant dense<0.000000e+00> : vector<8x32xf32>
    %260 = tpu.matmul %258, %259, %cst_89 {dimension_numbers = #tpu.dot_dimension_numbers<[1], [0], [0], [1], [0, 0, 1, 1], [], []>} : vector<8x8xf32>, vector<8x32xf32>, vector<8x32xf32> -> vector<8x32xf32>
    %261 = arith.addf %241, %260 : vector<8x32xf32>
    %262 = vector.extract_strided_slice %220 {offsets = [0, 16], sizes = [8, 8], strides = [1, 1]} : vector<8x32xf32> to vector<8x8xf32>
    %263 = vector.extract_strided_slice %221 {offsets = [0, 16], sizes = [10, 8], strides = [1, 1]} : vector<10x32xf32> to vector<10x8xf32>
    %264 = vector.extract_strided_slice %222 {offsets = [0, 16], sizes = [10, 8], strides = [1, 1]} : vector<10x32xf32> to vector<10x8xf32>
    %cst_90 = arith.constant dense<0.000000e+00> : vector<8x10xf32>
    %265 = tpu.matmul %262, %263, %cst_90 {dimension_numbers = #tpu.dot_dimension_numbers<[1], [1], [0], [0], [0, 0, 1, 0], [], []>} : vector<8x8xf32>, vector<10x8xf32>, vector<8x10xf32> -> vector<8x10xf32>
    %cst_91 = arith.constant 0.353553385 : f32
    %266 = vector.broadcast %cst_91 : f32 to vector<8x10xf32>
    %267 = arith.mulf %265, %266 : vector<8x10xf32>
    %cst_92 = arith.constant dense<0xFF800000> : vector<8xf32>
    %268 = vector.multi_reduction <maximumf>, %267, %cst_92 [1] : vector<8x10xf32> to vector<8xf32>
    %269 = vector.shape_cast %268 : vector<8xf32> to vector<8x1xf32>
    %270 = vector.broadcast %269 : vector<8x1xf32> to vector<8x10xf32>
    %271 = arith.subf %267, %270 : vector<8x10xf32>
    %272 = math.exp %271 : vector<8x10xf32>
    %cst_93 = arith.constant dense<0.000000e+00> : vector<8xf32>
    %273 = vector.multi_reduction <add>, %272, %cst_93 [1] : vector<8x10xf32> to vector<8xf32>
    %274 = vector.shape_cast %273 : vector<8xf32> to vector<8x1xf32>
    %275 = tpu.reciprocal %274 {approx = true} : vector<8x1xf32> -> vector<8x1xf32>
    %276 = vector.broadcast %275 : vector<8x1xf32> to vector<8x10xf32>
    %277 = arith.mulf %272, %276 : vector<8x10xf32>
    %cst_94 = arith.constant dense<0.000000e+00> : vector<8x8xf32>
    %278 = tpu.matmul %277, %264, %cst_94 {dimension_numbers = #tpu.dot_dimension_numbers<[1], [0], [0], [1], [0, 0, 1, 1], [], []>} : vector<8x10xf32>, vector<10x8xf32>, vector<8x8xf32> -> vector<8x8xf32>
    %279 = vector.extract_strided_slice %206 {offsets = [16, 0], sizes = [8, 32], strides = [1, 1]} : vector<32x32xf32> to vector<8x32xf32>
    %cst_95 = arith.constant dense<0.000000e+00> : vector<8x32xf32>
    %280 = tpu.matmul %278, %279, %cst_95 {dimension_numbers = #tpu.dot_dimension_numbers<[1], [0], [0], [1], [0, 0, 1, 1], [], []>} : vector<8x8xf32>, vector<8x32xf32>, vector<8x32xf32> -> vector<8x32xf32>
    %281 = arith.addf %261, %280 : vector<8x32xf32>
    %282 = vector.extract_strided_slice %220 {offsets = [0, 24], sizes = [8, 8], strides = [1, 1]} : vector<8x32xf32> to vector<8x8xf32>
    %283 = vector.extract_strided_slice %221 {offsets = [0, 24], sizes = [10, 8], strides = [1, 1]} : vector<10x32xf32> to vector<10x8xf32>
    %284 = vector.extract_strided_slice %222 {offsets = [0, 24], sizes = [10, 8], strides = [1, 1]} : vector<10x32xf32> to vector<10x8xf32>
    %cst_96 = arith.constant dense<0.000000e+00> : vector<8x10xf32>
    %285 = tpu.matmul %282, %283, %cst_96 {dimension_numbers = #tpu.dot_dimension_numbers<[1], [1], [0], [0], [0, 0, 1, 0], [], []>} : vector<8x8xf32>, vector<10x8xf32>, vector<8x10xf32> -> vector<8x10xf32>
    %cst_97 = arith.constant 0.353553385 : f32
    %286 = vector.broadcast %cst_97 : f32 to vector<8x10xf32>
    %287 = arith.mulf %285, %286 : vector<8x10xf32>
    %cst_98 = arith.constant dense<0xFF800000> : vector<8xf32>
    %288 = vector.multi_reduction <maximumf>, %287, %cst_98 [1] : vector<8x10xf32> to vector<8xf32>
    %289 = vector.shape_cast %288 : vector<8xf32> to vector<8x1xf32>
    %290 = vector.broadcast %289 : vector<8x1xf32> to vector<8x10xf32>
    %291 = arith.subf %287, %290 : vector<8x10xf32>
    %292 = math.exp %291 : vector<8x10xf32>
    %cst_99 = arith.constant dense<0.000000e+00> : vector<8xf32>
    %293 = vector.multi_reduction <add>, %292, %cst_99 [1] : vector<8x10xf32> to vector<8xf32>
    %294 = vector.shape_cast %293 : vector<8xf32> to vector<8x1xf32>
    %295 = tpu.reciprocal %294 {approx = true} : vector<8x1xf32> -> vector<8x1xf32>
    %296 = vector.broadcast %295 : vector<8x1xf32> to vector<8x10xf32>
    %297 = arith.mulf %292, %296 : vector<8x10xf32>
    %cst_100 = arith.constant dense<0.000000e+00> : vector<8x8xf32>
    %298 = tpu.matmul %297, %284, %cst_100 {dimension_numbers = #tpu.dot_dimension_numbers<[1], [0], [0], [1], [0, 0, 1, 1], [], []>} : vector<8x10xf32>, vector<10x8xf32>, vector<8x8xf32> -> vector<8x8xf32>
    %299 = vector.extract_strided_slice %206 {offsets = [24, 0], sizes = [8, 32], strides = [1, 1]} : vector<32x32xf32> to vector<8x32xf32>
    %cst_101 = arith.constant dense<0.000000e+00> : vector<8x32xf32>
    %300 = tpu.matmul %298, %299, %cst_101 {dimension_numbers = #tpu.dot_dimension_numbers<[1], [0], [0], [1], [0, 0, 1, 1], [], []>} : vector<8x8xf32>, vector<8x32xf32>, vector<8x32xf32> -> vector<8x32xf32>
    %301 = arith.addf %281, %300 : vector<8x32xf32>
    %302 = vector.broadcast %207 : vector<1x32xf32> to vector<8x32xf32>
    %303 = arith.addf %301, %302 : vector<8x32xf32>
    %304 = vector.extract_strided_slice %212 {offsets = [8, 0], sizes = [8, 32], strides = [1, 1]} : vector<16x32xf32> to vector<8x32xf32>
    %305 = vector.extract_strided_slice %218 {offsets = [10, 0], sizes = [10, 32], strides = [1, 1]} : vector<20x32xf32> to vector<10x32xf32>
    %306 = vector.extract_strided_slice %219 {offsets = [10, 0], sizes = [10, 32], strides = [1, 1]} : vector<20x32xf32> to vector<10x32xf32>
    %307 = vector.extract_strided_slice %304 {offsets = [0, 0], sizes = [8, 8], strides = [1, 1]} : vector<8x32xf32> to vector<8x8xf32>
    %308 = vector.extract_strided_slice %305 {offsets = [0, 0], sizes = [10, 8], strides = [1, 1]} : vector<10x32xf32> to vector<10x8xf32>
    %309 = vector.extract_strided_slice %306 {offsets = [0, 0], sizes = [10, 8], strides = [1, 1]} : vector<10x32xf32> to vector<10x8xf32>
    %cst_102 = arith.constant dense<0.000000e+00> : vector<8x10xf32>
    %310 = tpu.matmul %307, %308, %cst_102 {dimension_numbers = #tpu.dot_dimension_numbers<[1], [1], [0], [0], [0, 0, 1, 0], [], []>} : vector<8x8xf32>, vector<10x8xf32>, vector<8x10xf32> -> vector<8x10xf32>
    %cst_103 = arith.constant 0.353553385 : f32
    %311 = vector.broadcast %cst_103 : f32 to vector<8x10xf32>
    %312 = arith.mulf %310, %311 : vector<8x10xf32>
    %cst_104 = arith.constant dense<0xFF800000> : vector<8xf32>
    %313 = vector.multi_reduction <maximumf>, %312, %cst_104 [1] : vector<8x10xf32> to vector<8xf32>
    %314 = vector.shape_cast %313 : vector<8xf32> to vector<8x1xf32>
    %315 = vector.broadcast %314 : vector<8x1xf32> to vector<8x10xf32>
    %316 = arith.subf %312, %315 : vector<8x10xf32>
    %317 = math.exp %316 : vector<8x10xf32>
    %cst_105 = arith.constant dense<0.000000e+00> : vector<8xf32>
    %318 = vector.multi_reduction <add>, %317, %cst_105 [1] : vector<8x10xf32> to vector<8xf32>
    %319 = vector.shape_cast %318 : vector<8xf32> to vector<8x1xf32>
    %320 = tpu.reciprocal %319 {approx = true} : vector<8x1xf32> -> vector<8x1xf32>
    %321 = vector.broadcast %320 : vector<8x1xf32> to vector<8x10xf32>
    %322 = arith.mulf %317, %321 : vector<8x10xf32>
    %cst_106 = arith.constant dense<0.000000e+00> : vector<8x8xf32>
    %323 = tpu.matmul %322, %309, %cst_106 {dimension_numbers = #tpu.dot_dimension_numbers<[1], [0], [0], [1], [0, 0, 1, 1], [], []>} : vector<8x10xf32>, vector<10x8xf32>, vector<8x8xf32> -> vector<8x8xf32>
    %324 = vector.extract_strided_slice %206 {offsets = [0, 0], sizes = [8, 32], strides = [1, 1]} : vector<32x32xf32> to vector<8x32xf32>
    %cst_107 = arith.constant dense<0.000000e+00> : vector<8x32xf32>
    %325 = tpu.matmul %323, %324, %cst_107 {dimension_numbers = #tpu.dot_dimension_numbers<[1], [0], [0], [1], [0, 0, 1, 1], [], []>} : vector<8x8xf32>, vector<8x32xf32>, vector<8x32xf32> -> vector<8x32xf32>
    %326 = vector.extract_strided_slice %304 {offsets = [0, 8], sizes = [8, 8], strides = [1, 1]} : vector<8x32xf32> to vector<8x8xf32>
    %327 = vector.extract_strided_slice %305 {offsets = [0, 8], sizes = [10, 8], strides = [1, 1]} : vector<10x32xf32> to vector<10x8xf32>
    %328 = vector.extract_strided_slice %306 {offsets = [0, 8], sizes = [10, 8], strides = [1, 1]} : vector<10x32xf32> to vector<10x8xf32>
    %cst_108 = arith.constant dense<0.000000e+00> : vector<8x10xf32>
    %329 = tpu.matmul %326, %327, %cst_108 {dimension_numbers = #tpu.dot_dimension_numbers<[1], [1], [0], [0], [0, 0, 1, 0], [], []>} : vector<8x8xf32>, vector<10x8xf32>, vector<8x10xf32> -> vector<8x10xf32>
    %cst_109 = arith.constant 0.353553385 : f32
    %330 = vector.broadcast %cst_109 : f32 to vector<8x10xf32>
    %331 = arith.mulf %329, %330 : vector<8x10xf32>
    %cst_110 = arith.constant dense<0xFF800000> : vector<8xf32>
    %332 = vector.multi_reduction <maximumf>, %331, %cst_110 [1] : vector<8x10xf32> to vector<8xf32>
    %333 = vector.shape_cast %332 : vector<8xf32> to vector<8x1xf32>
    %334 = vector.broadcast %333 : vector<8x1xf32> to vector<8x10xf32>
    %335 = arith.subf %331, %334 : vector<8x10xf32>
    %336 = math.exp %335 : vector<8x10xf32>
    %cst_111 = arith.constant dense<0.000000e+00> : vector<8xf32>
    %337 = vector.multi_reduction <add>, %336, %cst_111 [1] : vector<8x10xf32> to vector<8xf32>
    %338 = vector.shape_cast %337 : vector<8xf32> to vector<8x1xf32>
    %339 = tpu.reciprocal %338 {approx = true} : vector<8x1xf32> -> vector<8x1xf32>
    %340 = vector.broadcast %339 : vector<8x1xf32> to vector<8x10xf32>
    %341 = arith.mulf %336, %340 : vector<8x10xf32>
    %cst_112 = arith.constant dense<0.000000e+00> : vector<8x8xf32>
    %342 = tpu.matmul %341, %328, %cst_112 {dimension_numbers = #tpu.dot_dimension_numbers<[1], [0], [0], [1], [0, 0, 1, 1], [], []>} : vector<8x10xf32>, vector<10x8xf32>, vector<8x8xf32> -> vector<8x8xf32>
    %343 = vector.extract_strided_slice %206 {offsets = [8, 0], sizes = [8, 32], strides = [1, 1]} : vector<32x32xf32> to vector<8x32xf32>
    %cst_113 = arith.constant dense<0.000000e+00> : vector<8x32xf32>
    %344 = tpu.matmul %342, %343, %cst_113 {dimension_numbers = #tpu.dot_dimension_numbers<[1], [0], [0], [1], [0, 0, 1, 1], [], []>} : vector<8x8xf32>, vector<8x32xf32>, vector<8x32xf32> -> vector<8x32xf32>
    %345 = arith.addf %325, %344 : vector<8x32xf32>
    %346 = vector.extract_strided_slice %304 {offsets = [0, 16], sizes = [8, 8], strides = [1, 1]} : vector<8x32xf32> to vector<8x8xf32>
    %347 = vector.extract_strided_slice %305 {offsets = [0, 16], sizes = [10, 8], strides = [1, 1]} : vector<10x32xf32> to vector<10x8xf32>
    %348 = vector.extract_strided_slice %306 {offsets = [0, 16], sizes = [10, 8], strides = [1, 1]} : vector<10x32xf32> to vector<10x8xf32>
    %cst_114 = arith.constant dense<0.000000e+00> : vector<8x10xf32>
    %349 = tpu.matmul %346, %347, %cst_114 {dimension_numbers = #tpu.dot_dimension_numbers<[1], [1], [0], [0], [0, 0, 1, 0], [], []>} : vector<8x8xf32>, vector<10x8xf32>, vector<8x10xf32> -> vector<8x10xf32>
    %cst_115 = arith.constant 0.353553385 : f32
    %350 = vector.broadcast %cst_115 : f32 to vector<8x10xf32>
    %351 = arith.mulf %349, %350 : vector<8x10xf32>
    %cst_116 = arith.constant dense<0xFF800000> : vector<8xf32>
    %352 = vector.multi_reduction <maximumf>, %351, %cst_116 [1] : vector<8x10xf32> to vector<8xf32>
    %353 = vector.shape_cast %352 : vector<8xf32> to vector<8x1xf32>
    %354 = vector.broadcast %353 : vector<8x1xf32> to vector<8x10xf32>
    %355 = arith.subf %351, %354 : vector<8x10xf32>
    %356 = math.exp %355 : vector<8x10xf32>
    %cst_117 = arith.constant dense<0.000000e+00> : vector<8xf32>
    %357 = vector.multi_reduction <add>, %356, %cst_117 [1] : vector<8x10xf32> to vector<8xf32>
    %358 = vector.shape_cast %357 : vector<8xf32> to vector<8x1xf32>
    %359 = tpu.reciprocal %358 {approx = true} : vector<8x1xf32> -> vector<8x1xf32>
    %360 = vector.broadcast %359 : vector<8x1xf32> to vector<8x10xf32>
    %361 = arith.mulf %356, %360 : vector<8x10xf32>
    %cst_118 = arith.constant dense<0.000000e+00> : vector<8x8xf32>
    %362 = tpu.matmul %361, %348, %cst_118 {dimension_numbers = #tpu.dot_dimension_numbers<[1], [0], [0], [1], [0, 0, 1, 1], [], []>} : vector<8x10xf32>, vector<10x8xf32>, vector<8x8xf32> -> vector<8x8xf32>
    %363 = vector.extract_strided_slice %206 {offsets = [16, 0], sizes = [8, 32], strides = [1, 1]} : vector<32x32xf32> to vector<8x32xf32>
    %cst_119 = arith.constant dense<0.000000e+00> : vector<8x32xf32>
    %364 = tpu.matmul %362, %363, %cst_119 {dimension_numbers = #tpu.dot_dimension_numbers<[1], [0], [0], [1], [0, 0, 1, 1], [], []>} : vector<8x8xf32>, vector<8x32xf32>, vector<8x32xf32> -> vector<8x32xf32>
    %365 = arith.addf %345, %364 : vector<8x32xf32>
    %366 = vector.extract_strided_slice %304 {offsets = [0, 24], sizes = [8, 8], strides = [1, 1]} : vector<8x32xf32> to vector<8x8xf32>
    %367 = vector.extract_strided_slice %305 {offsets = [0, 24], sizes = [10, 8], strides = [1, 1]} : vector<10x32xf32> to vector<10x8xf32>
    %368 = vector.extract_strided_slice %306 {offsets = [0, 24], sizes = [10, 8], strides = [1, 1]} : vector<10x32xf32> to vector<10x8xf32>
    %cst_120 = arith.constant dense<0.000000e+00> : vector<8x10xf32>
    %369 = tpu.matmul %366, %367, %cst_120 {dimension_numbers = #tpu.dot_dimension_numbers<[1], [1], [0], [0], [0, 0, 1, 0], [], []>} : vector<8x8xf32>, vector<10x8xf32>, vector<8x10xf32> -> vector<8x10xf32>
    %cst_121 = arith.constant 0.353553385 : f32
    %370 = vector.broadcast %cst_121 : f32 to vector<8x10xf32>
    %371 = arith.mulf %369, %370 : vector<8x10xf32>
    %cst_122 = arith.constant dense<0xFF800000> : vector<8xf32>
    %372 = vector.multi_reduction <maximumf>, %371, %cst_122 [1] : vector<8x10xf32> to vector<8xf32>
    %373 = vector.shape_cast %372 : vector<8xf32> to vector<8x1xf32>
    %374 = vector.broadcast %373 : vector<8x1xf32> to vector<8x10xf32>
    %375 = arith.subf %371, %374 : vector<8x10xf32>
    %376 = math.exp %375 : vector<8x10xf32>
    %cst_123 = arith.constant dense<0.000000e+00> : vector<8xf32>
    %377 = vector.multi_reduction <add>, %376, %cst_123 [1] : vector<8x10xf32> to vector<8xf32>
    %378 = vector.shape_cast %377 : vector<8xf32> to vector<8x1xf32>
    %379 = tpu.reciprocal %378 {approx = true} : vector<8x1xf32> -> vector<8x1xf32>
    %380 = vector.broadcast %379 : vector<8x1xf32> to vector<8x10xf32>
    %381 = arith.mulf %376, %380 : vector<8x10xf32>
    %cst_124 = arith.constant dense<0.000000e+00> : vector<8x8xf32>
    %382 = tpu.matmul %381, %368, %cst_124 {dimension_numbers = #tpu.dot_dimension_numbers<[1], [0], [0], [1], [0, 0, 1, 1], [], []>} : vector<8x10xf32>, vector<10x8xf32>, vector<8x8xf32> -> vector<8x8xf32>
    %383 = vector.extract_strided_slice %206 {offsets = [24, 0], sizes = [8, 32], strides = [1, 1]} : vector<32x32xf32> to vector<8x32xf32>
    %cst_125 = arith.constant dense<0.000000e+00> : vector<8x32xf32>
    %384 = tpu.matmul %382, %383, %cst_125 {dimension_numbers = #tpu.dot_dimension_numbers<[1], [0], [0], [1], [0, 0, 1, 1], [], []>} : vector<8x8xf32>, vector<8x32xf32>, vector<8x32xf32> -> vector<8x32xf32>
    %385 = arith.addf %365, %384 : vector<8x32xf32>
    %386 = vector.broadcast %207 : vector<1x32xf32> to vector<8x32xf32>
    %387 = arith.addf %385, %386 : vector<8x32xf32>
    %388 = tpu.concatenate %303, %387 in 0 : vector<8x32xf32>, vector<8x32xf32> -> vector<16x32xf32>
    %c0_126 = arith.constant 0 : index
    %c0_127 = arith.constant 0 : index
    %389 = vector.load %arg12[%c0_126, %c0_127] : memref<1x32xf32, #tpu.memory_space<vmem>>, vector<1x32xf32>
    %c0_128 = arith.constant 0 : index
    %c0_129 = arith.constant 0 : index
    %390 = vector.load %arg13[%c0_128, %c0_129] : memref<1x32xf32, #tpu.memory_space<vmem>>, vector<1x32xf32>
    %391 = arith.addf %203, %388 : vector<16x32xf32>
    %cst_130 = arith.constant dense<0.000000e+00> : vector<16xf32>
    %392 = vector.multi_reduction <add>, %391, %cst_130 [1] : vector<16x32xf32> to vector<16xf32>
    %393 = vector.shape_cast %392 : vector<16xf32> to vector<16x1xf32>
    %cst_131 = arith.constant 3.200000e+01 : f32
    %394 = vector.broadcast %cst_131 : f32 to vector<16x1xf32>
    %395 = arith.divf %393, %394 : vector<16x1xf32>
    %396 = vector.broadcast %395 : vector<16x1xf32> to vector<16x32xf32>
    %397 = arith.subf %391, %396 : vector<16x32xf32>
    %398 = arith.mulf %397, %397 : vector<16x32xf32>
    %cst_132 = arith.constant dense<0.000000e+00> : vector<16xf32>
    %399 = vector.multi_reduction <add>, %398, %cst_132 [1] : vector<16x32xf32> to vector<16xf32>
    %400 = vector.shape_cast %399 : vector<16xf32> to vector<16x1xf32>
    %cst_133 = arith.constant 3.200000e+01 : f32
    %401 = vector.broadcast %cst_133 : f32 to vector<16x1xf32>
    %402 = arith.divf %400, %401 : vector<16x1xf32>
    %cst_134 = arith.constant 9.99999974E-6 : f32
    %403 = vector.broadcast %cst_134 : f32 to vector<16x1xf32>
    %404 = arith.addf %402, %403 : vector<16x1xf32>
    %405 = math.rsqrt %404 : vector<16x1xf32>
    %406 = vector.broadcast %405 : vector<16x1xf32> to vector<16x32xf32>
    %407 = arith.mulf %397, %406 : vector<16x32xf32>
    %408 = vector.broadcast %389 : vector<1x32xf32> to vector<16x32xf32>
    %409 = arith.mulf %407, %408 : vector<16x32xf32>
    %410 = vector.broadcast %390 : vector<1x32xf32> to vector<16x32xf32>
    %411 = arith.addf %409, %410 : vector<16x32xf32>
    %c0_135 = arith.constant 0 : index
    %c0_136 = arith.constant 0 : index
    %412 = vector.load %arg16[%c0_135, %c0_136] : memref<32x128xf32, #tpu.memory_space<vmem>>, vector<32x128xf32>
    %cst_137 = arith.constant dense<0.000000e+00> : vector<16x128xf32>
    %413 = tpu.matmul %411, %412, %cst_137 {dimension_numbers = #tpu.dot_dimension_numbers<[1], [0], [0], [1], [0, 0, 1, 1], [], []>} : vector<16x32xf32>, vector<32x128xf32>, vector<16x128xf32> -> vector<16x128xf32>
    %c0_138 = arith.constant 0 : index
    %c0_139 = arith.constant 0 : index
    %414 = vector.load %arg17[%c0_138, %c0_139] : memref<1x128xf32, #tpu.memory_space<vmem>>, vector<1x128xf32>
    %415 = vector.broadcast %414 : vector<1x128xf32> to vector<16x128xf32>
    %416 = arith.addf %413, %415 : vector<16x128xf32>
    %cst_140 = arith.constant 0.000000e+00 : f32
    %417 = vector.broadcast %cst_140 : f32 to vector<16x128xf32>
    %418 = arith.maximumf %416, %417 : vector<16x128xf32>
    %c0_141 = arith.constant 0 : index
    %c0_142 = arith.constant 0 : index
    %419 = vector.load %arg18[%c0_141, %c0_142] : memref<128x32xf32, #tpu.memory_space<vmem>>, vector<128x32xf32>
    %cst_143 = arith.constant dense<0.000000e+00> : vector<16x32xf32>
    %420 = tpu.matmul %418, %419, %cst_143 {dimension_numbers = #tpu.dot_dimension_numbers<[1], [0], [0], [1], [0, 0, 1, 1], [], []>} : vector<16x128xf32>, vector<128x32xf32>, vector<16x32xf32> -> vector<16x32xf32>
    %c0_144 = arith.constant 0 : index
    %c0_145 = arith.constant 0 : index
    %421 = vector.load %arg19[%c0_144, %c0_145] : memref<1x32xf32, #tpu.memory_space<vmem>>, vector<1x32xf32>
    %422 = vector.broadcast %421 : vector<1x32xf32> to vector<16x32xf32>
    %423 = arith.addf %420, %422 : vector<16x32xf32>
    %c0_146 = arith.constant 0 : index
    %c0_147 = arith.constant 0 : index
    %424 = vector.load %arg14[%c0_146, %c0_147] : memref<1x32xf32, #tpu.memory_space<vmem>>, vector<1x32xf32>
    %c0_148 = arith.constant 0 : index
    %c0_149 = arith.constant 0 : index
    %425 = vector.load %arg15[%c0_148, %c0_149] : memref<1x32xf32, #tpu.memory_space<vmem>>, vector<1x32xf32>
    %426 = arith.addf %411, %423 : vector<16x32xf32>
    %cst_150 = arith.constant dense<0.000000e+00> : vector<16xf32>
    %427 = vector.multi_reduction <add>, %426, %cst_150 [1] : vector<16x32xf32> to vector<16xf32>
    %428 = vector.shape_cast %427 : vector<16xf32> to vector<16x1xf32>
    %cst_151 = arith.constant 3.200000e+01 : f32
    %429 = vector.broadcast %cst_151 : f32 to vector<16x1xf32>
    %430 = arith.divf %428, %429 : vector<16x1xf32>
    %431 = vector.broadcast %430 : vector<16x1xf32> to vector<16x32xf32>
    %432 = arith.subf %426, %431 : vector<16x32xf32>
    %433 = arith.mulf %432, %432 : vector<16x32xf32>
    %cst_152 = arith.constant dense<0.000000e+00> : vector<16xf32>
    %434 = vector.multi_reduction <add>, %433, %cst_152 [1] : vector<16x32xf32> to vector<16xf32>
    %435 = vector.shape_cast %434 : vector<16xf32> to vector<16x1xf32>
    %cst_153 = arith.constant 3.200000e+01 : f32
    %436 = vector.broadcast %cst_153 : f32 to vector<16x1xf32>
    %437 = arith.divf %435, %436 : vector<16x1xf32>
    %cst_154 = arith.constant 9.99999974E-6 : f32
    %438 = vector.broadcast %cst_154 : f32 to vector<16x1xf32>
    %439 = arith.addf %437, %438 : vector<16x1xf32>
    %440 = math.rsqrt %439 : vector<16x1xf32>
    %441 = vector.broadcast %440 : vector<16x1xf32> to vector<16x32xf32>
    %442 = arith.mulf %432, %441 : vector<16x32xf32>
    %443 = vector.broadcast %424 : vector<1x32xf32> to vector<16x32xf32>
    %444 = arith.mulf %442, %443 : vector<16x32xf32>
    %445 = vector.broadcast %425 : vector<1x32xf32> to vector<16x32xf32>
    %446 = arith.addf %444, %445 : vector<16x32xf32>
    %c0_155 = arith.constant 0 : index
    %c0_156 = arith.constant 0 : index
    %447 = vector.load %arg20[%c0_155, %c0_156] : memref<16x32xf32, #tpu.memory_space<vmem>>, vector<16x32xf32>
    tpu.vector_store %arg20[%c0_155, %c0_156], %446 {strides = array<i32>} : memref<16x32xf32, #tpu.memory_space<vmem>>, vector<16x32xf32>,
    return
  }
}

</mosaic_0001>

<llo_original>
// kernel: decoder_layer_forward.1
$region0: #{decoder_layer_forward.1}
  #allocation0 [shape = 'u32[]', space=smem, size = 0x4, offset = 0x4, fixed_abs, tag = 'smem constant byte address 0x4 - core index']
  #allocation1 [shape = 'u32[72,128]{1,0:T(1,128)}', space=vmem, size = 0x9000, scoped, tag = 'internal scratch']
  %s0 = inlined_call_operand.vmem [shape: f32[16,32], index: 0, kind: input, shape index: {}]
  %s1 = inlined_call_operand.vmem [shape: f32[20,32], index: 1, kind: input, shape index: {}]
  %s2 = inlined_call_operand.vmem [shape: f32[32,96], index: 2, kind: input, shape index: {}]
  %s3 = inlined_call_operand.vmem [shape: f32[1,96], index: 3, kind: input, shape index: {}]
  %s4 = inlined_call_operand.vmem [shape: f32[32,32], index: 4, kind: input, shape index: {}]
  %s5 = inlined_call_operand.vmem [shape: f32[1,32], index: 5, kind: input, shape index: {}]
  %s6 = inlined_call_operand.vmem [shape: f32[32,96], index: 6, kind: input, shape index: {}]
  %s7 = inlined_call_operand.vmem [shape: f32[1,96], index: 7, kind: input, shape index: {}]
  %s8 = inlined_call_operand.vmem [shape: f32[32,32], index: 8, kind: input, shape index: {}]
  %s9 = inlined_call_operand.vmem [shape: f32[1,32], index: 9, kind: input, shape index: {}]
  %s10 = inlined_call_operand.vmem [shape: f32[1,32], index: 10, kind: input, shape index: {}]
  %s11 = inlined_call_operand.vmem [shape: f32[1,32], index: 11, kind: input, shape index: {}]
  %s12 = inlined_call_operand.vmem [shape: f32[1,32], index: 12, kind: input, shape index: {}]
  %s13 = inlined_call_operand.vmem [shape: f32[1,32], index: 13, kind: input, shape index: {}]
  %s14 = inlined_call_operand.vmem [shape: f32[1,32], index: 14, kind: input, shape index: {}]
  %s15 = inlined_call_operand.vmem [shape: f32[1,32], index: 15, kind: input, shape index: {}]
  %s16 = inlined_call_operand.vmem [shape: f32[32,128], index: 16, kind: input, shape index: {}]
  %s17 = inlined_call_operand.vmem [shape: f32[1,128], index: 17, kind: input, shape index: {}]
  %s18 = inlined_call_operand.vmem [shape: f32[128,32], index: 18, kind: input, shape index: {}]
  %s19 = inlined_call_operand.vmem [shape: f32[1,32], index: 19, kind: input, shape index: {}]
  %s20 = inlined_call_operand.vmem [shape: f32[16,32], index: 20, kind: output, shape index: {}]
  %s21 = sld [smem:[#allocation0]]
  $region90: #{decoder_layer_forward.1} parent=0
    _
  %s23 = ssub.s32 1, %s21
  %s24 = scalar_select 0, %s23, %s21
  // Predicated region
  $region2: #{decoder_layer_forward.1} parent=0 // pred_check
    _
  $region3: #{decoder_layer_forward.1} parent=0 // pred_check_branch
    %26 = sbr.rel (0) target = $region5
  $region4: #{decoder_layer_forward.1} parent=0 // pred_region
    _
  $region5: #{decoder_layer_forward.1} parent=0 // pred_fallthru
    _
  // Predicated region
  $region6: #{decoder_layer_forward.1} parent=0 // pred_check
    _
  $region7: #{decoder_layer_forward.1} parent=0 // pred_check_branch
    %28 = sbr.rel (0) target = $region9
  $region8: #{decoder_layer_forward.1} parent=0 // pred_region
    _
  $region9: #{decoder_layer_forward.1} parent=0 // pred_fallthru
    _
  // Predicated region
  $region10: #{decoder_layer_forward.1} parent=0 // pred_check
    _
  $region11: #{decoder_layer_forward.1} parent=0 // pred_check_branch
    %30 = sbr.rel (0) target = $region13
  $region12: #{decoder_layer_forward.1} parent=0 // pred_region
    _
  $region13: #{decoder_layer_forward.1} parent=0 // pred_fallthru
    _
  // Predicated region
  $region14: #{decoder_layer_forward.1} parent=0 // pred_check
    _
  $region15: #{decoder_layer_forward.1} parent=0 // pred_check_branch
    %32 = sbr.rel (0) target = $region17
  $region16: #{decoder_layer_forward.1} parent=0 // pred_region
    _
  $region17: #{decoder_layer_forward.1} parent=0 // pred_fallthru
    _
  // Predicated region
  $region18: #{decoder_layer_forward.1} parent=0 // pred_check
    _
  $region19: #{decoder_layer_forward.1} parent=0 // pred_check_branch
    %34 = sbr.rel (0) target = $region21
  $region20: #{decoder_layer_forward.1} parent=0 // pred_region
    _
  $region21: #{decoder_layer_forward.1} parent=0 // pred_fallthru
    _
  // Predicated region
  $region22: #{decoder_layer_forward.1} parent=0 // pred_check
    _
  $region23: #{decoder_layer_forward.1} parent=0 // pred_check_branch
    %36 = sbr.rel (0) target = $region25
  $region24: #{decoder_layer_forward.1} parent=0 // pred_region
    _
  $region25: #{decoder_layer_forward.1} parent=0 // pred_fallthru
    _
  // Predicated region
  $region26: #{decoder_layer_forward.1} parent=0 // pred_check
    _
  $region27: #{decoder_layer_forward.1} parent=0 // pred_check_branch
    %38 = sbr.rel (0) target = $region29
  $region28: #{decoder_layer_forward.1} parent=0 // pred_region
    _
  $region29: #{decoder_layer_forward.1} parent=0 // pred_fallthru
    _
  // Predicated region
  $region30: #{decoder_layer_forward.1} parent=0 // pred_check
    _
  $region31: #{decoder_layer_forward.1} parent=0 // pred_check_branch
    %40 = sbr.rel (0) target = $region33
  $region32: #{decoder_layer_forward.1} parent=0 // pred_region
    _
  $region33: #{decoder_layer_forward.1} parent=0 // pred_fallthru
    _
  // Predicated region
  $region34: #{decoder_layer_forward.1} parent=0 // pred_check
    _
  $region35: #{decoder_layer_forward.1} parent=0 // pred_check_branch
    %42 = sbr.rel (0) target = $region37
  $region36: #{decoder_layer_forward.1} parent=0 // pred_region
    _
  $region37: #{decoder_layer_forward.1} parent=0 // pred_fallthru
    _
  // Predicated region
  $region38: #{decoder_layer_forward.1} parent=0 // pred_check
    _
  $region39: #{decoder_layer_forward.1} parent=0 // pred_check_branch
    %44 = sbr.rel (0) target = $region41
  $region40: #{decoder_layer_forward.1} parent=0 // pred_region
    _
  $region41: #{decoder_layer_forward.1} parent=0 // pred_fallthru
    _
  // Predicated region
  $region42: #{decoder_layer_forward.1} parent=0 // pred_check
    _
  $region43: #{decoder_layer_forward.1} parent=0 // pred_check_branch
    %46 = sbr.rel (0) target = $region45
  $region44: #{decoder_layer_forward.1} parent=0 // pred_region
    _
  $region45: #{decoder_layer_forward.1} parent=0 // pred_fallthru
    _
  // Predicated region
  $region46: #{decoder_layer_forward.1} parent=0 // pred_check
    _
  $region47: #{decoder_layer_forward.1} parent=0 // pred_check_branch
    %48 = sbr.rel (0) target = $region49
  $region48: #{decoder_layer_forward.1} parent=0 // pred_region
    _
  $region49: #{decoder_layer_forward.1} parent=0 // pred_fallthru
    _
  // Predicated region
  $region50: #{decoder_layer_forward.1} parent=0 // pred_check
    _
  $region51: #{decoder_layer_forward.1} parent=0 // pred_check_branch
    %50 = sbr.rel (0) target = $region53
  $region52: #{decoder_layer_forward.1} parent=0 // pred_region
    _
  $region53: #{decoder_layer_forward.1} parent=0 // pred_fallthru
    _
  // Predicated region
  $region54: #{decoder_layer_forward.1} parent=0 // pred_check
    _
  $region55: #{decoder_layer_forward.1} parent=0 // pred_check_branch
    %52 = sbr.rel (0) target = $region57
  $region56: #{decoder_layer_forward.1} parent=0 // pred_region
    _
  $region57: #{decoder_layer_forward.1} parent=0 // pred_fallthru
    _
  // Predicated region
  $region58: #{decoder_layer_forward.1} parent=0 // pred_check
    _
  $region59: #{decoder_layer_forward.1} parent=0 // pred_check_branch
    %54 = sbr.rel (0) target = $region61
  $region60: #{decoder_layer_forward.1} parent=0 // pred_region
    _
  $region61: #{decoder_layer_forward.1} parent=0 // pred_fallthru
    _
  // Predicated region
  $region62: #{decoder_layer_forward.1} parent=0 // pred_check
    _
  $region63: #{decoder_layer_forward.1} parent=0 // pred_check_branch
    %56 = sbr.rel (0) target = $region65
  $region64: #{decoder_layer_forward.1} parent=0 // pred_region
    _
  $region65: #{decoder_layer_forward.1} parent=0 // pred_fallthru
    _
  // Predicated region
  $region66: #{decoder_layer_forward.1} parent=0 // pred_check
    _
  $region67: #{decoder_layer_forward.1} parent=0 // pred_check_branch
    %58 = sbr.rel (0) target = $region69
  $region68: #{decoder_layer_forward.1} parent=0 // pred_region
    _
  $region69: #{decoder_layer_forward.1} parent=0 // pred_fallthru
    _
  // Predicated region
  $region70: #{decoder_layer_forward.1} parent=0 // pred_check
    _
  $region71: #{decoder_layer_forward.1} parent=0 // pred_check_branch
    %60 = sbr.rel (0) target = $region73
  $region72: #{decoder_layer_forward.1} parent=0 // pred_region
    _
  $region73: #{decoder_layer_forward.1} parent=0 // pred_fallthru
    _
  // Predicated region
  $region74: #{decoder_layer_forward.1} parent=0 // pred_check
    _
  $region75: #{decoder_layer_forward.1} parent=0 // pred_check_branch
    %62 = sbr.rel (0) target = $region77
  $region76: #{decoder_layer_forward.1} parent=0 // pred_region
    _
  $region77: #{decoder_layer_forward.1} parent=0 // pred_fallthru
    _
  // Predicated region
  $region78: #{decoder_layer_forward.1} parent=0 // pred_check
    _
  $region79: #{decoder_layer_forward.1} parent=0 // pred_check_branch
    %64 = sbr.rel (0) target = $region81
  $region80: #{decoder_layer_forward.1} parent=0 // pred_region
    _
  $region81: #{decoder_layer_forward.1} parent=0 // pred_fallthru
    _
  %v65 = vld [vmem:[%s0] sm:$0xff]
  %v66 = vld [vmem:[%s0 + $0x8] sm:$0xff]
  %v67 = vld [vmem:[%s1] sm:$0xff]
  %v68 = vld [vmem:[%s1 + $0x8] sm:$0xff]
  %v69 = vld [vmem:[%s1 + $0x10] sm:$0xf]
  %v70 = vld [vmem:[%s2] sm:$0xff]
  %v71 = vld [vmem:[%s2 + $0x8] sm:$0xff]
  %v72 = vld [vmem:[%s2 + $0x10] sm:$0xff]
  %v73 = vld [vmem:[%s2 + $0x18] sm:$0xff]
  %v74 = vld [vmem:[%s3] sm:$0x1]
  %v75 = vld [vmem:[%s4] sm:$0xff]
  %v76 = vld [vmem:[%s4 + $0x8] sm:$0xff]
  %v77 = vld [vmem:[%s4 + $0x10] sm:$0xff]
  %v78 = vld [vmem:[%s4 + $0x18] sm:$0xff]
  %v79 = vld [vmem:[%s5] sm:$0x1]
  %v81 = vperm.slane %v74, 0
  %vm83 = vcmask 261120
  %v85 = vsel %vm83, %v65, 0
  %v88 = vsel %vm83, %v66, 0
  %90 = vmatpush.msra.mxu0 0.0
  %91 = vmatpush.msra.mxu0 0.0
  %92 = vmatpush.msra.mxu0 0.0
  %93 = vmatpush.msra.mxu0 0.0
  %94 = vmatpush.msra.mxu0 0.0
  %95 = vmatpush.msra.mxu0 0.0
  %96 = vmatpush.msra.mxu0 0.0
  %97 = vmatpush.msra.mxu0 0.0
  %98 = vmatpush.msra.mxu0 0.0
  %99 = vmatpush.msra.mxu0 0.0
  %100 = vmatpush.msra.mxu0 0.0
  %101 = vmatpush.msra.mxu0 0.0
  %102 = vmatpush.msra.mxu0 %v73
  %103 = vmatpush.msra.mxu0 %v72
  %104 = vmatpush.msra.mxu0 %v71
  %105 = vmatpush.msra.mxu0 %v70
  %106 = vmatmul.f32.gmra.mxu0 %v85
  %v107 = vpop.f32.mrf.mxu0
  %v108 = vadd.f32 %v81, %v107
  %109 = vmatmul.f32.gmra.mxu0 %v88
  %v110 = vpop.f32.mrf.mxu0
  %v111 = vadd.f32 %v81, %v110
  %112 = vdwg.mxu0
  %114 = vrot.lane.b32.xlu0 %v108, 96
  %v115 = vpop.permute.xlu0 %114
  %vm116 = vcmask 64512
  %v117 = vsel %vm116, %v108, 0
  %v119 = vsel %vm116, %v115, 0
  %121 = vmatpush.xpose.msra.mxu0 0.0
  %122 = vmatpush.xpose.msra.mxu0 0.0
  %123 = vmatpush.xpose.msra.mxu0 0.0
  %124 = vmatpush.xpose.msra.mxu0 0.0
  %125 = vmatpush.xpose.msra.mxu0 0.0
  %126 = vmatpush.xpose.msra.mxu0 0.0
  %127 = vmatpush.xpose.msra.mxu0 0.0
  %128 = vmatpush.xpose.msra.mxu0 0.0
  %129 = vmatpush.xpose.msra.mxu0 0.0
  %130 = vmatpush.xpose.msra.mxu0 0.0
  %131 = vmatpush.xpose.msra.mxu0 0.0
  %132 = vmatpush.xpose.msra.mxu0 0.0
  %133 = vmatpush.xpose.msra.mxu0 0.0
  %134 = vmatpush.xpose.msra.mxu0 0.0
  %135 = vmatpush.xpose.msra.mxu0 0.0
  %136 = vmatpush.xpose.msra.mxu0 %v119
  %137 = vmatmul.f32.gmra.mxu0 %v117
  %v138 = vpop.f32.mrf.mxu0
  %v139 = vadd.f32 0.0, %v138
  %140 = vdwg.mxu0
  %v141 = vmul.f32 %v139, 0.35355338
  %v142 = vsel %vm116, %v141, -inf
  %143 = vmax.xlane.f32.xlu0 %v142
  %v144 = vpop.xlane.xlu0 %143
  %v145 = vsub.f32 %v141, %v144
  %v146 = vmul.f32 %v145, 1.442695
  %v147 = vpow.pop %v146
  %v148 = vsel %vm116, %v147, 0.0
  %149 = vadd.xlane.f32.xlu0 %v148
  %v150 = vpop.xlane.xlu0 %149
  %v151 = vrcp.pop %v150
  %v152 = vmul.f32 %v147, %v151
  %153 = vrot.lane.b32.xlu0 %v108, 64
  %v154 = vpop.permute.xlu0 %153
  %v157 = vsel %vm116, %v152, 0
  %159 = vmatpush.msra.mxu0 0.0
  %160 = vmatpush.msra.mxu0 0.0
  %161 = vmatpush.msra.mxu0 0.0
  %162 = vmatpush.msra.mxu0 0.0
  %163 = vmatpush.msra.mxu0 0.0
  %164 = vmatpush.msra.mxu0 0.0
  %165 = vmatpush.msra.mxu0 0.0
  %166 = vmatpush.msra.mxu0 0.0
  %167 = vmatpush.msra.mxu0 0.0
  %168 = vmatpush.msra.mxu0 0.0
  %169 = vmatpush.msra.mxu0 0.0
  %170 = vmatpush.msra.mxu0 0.0
  %171 = vmatpush.msra.mxu0 0.0
  %172 = vmatpush.msra.mxu0 0.0
  %173 = vmatpush.msra.mxu0 0.0
  %174 = vmatpush.msra.mxu0 %v154
  %175 = vmatmul.f32.gmra.mxu0 %v157
  %v176 = vpop.f32.mrf.mxu0
  %v177 = vadd.f32 0.0, %v176
  %178 = vdwg.mxu0
  %179 = vrot.lane.b32.xlu0 %v108, 120
  %v180 = vpop.permute.xlu0 %179
  %181 = vrot.lane.b32.xlu0 %v108, 88
  %v182 = vpop.permute.xlu0 %181
  %v183 = vsel %vm116, %v180, 0
  %v185 = vsel %vm116, %v182, 0
  %187 = vmatpush.xpose.msra.mxu0 0.0
  %188 = vmatpush.xpose.msra.mxu0 0.0
  %189 = vmatpush.xpose.msra.mxu0 0.0
  %190 = vmatpush.xpose.msra.mxu0 0.0
  %191 = vmatpush.xpose.msra.mxu0 0.0
  %192 = vmatpush.xpose.msra.mxu0 0.0
  %193 = vmatpush.xpose.msra.mxu0 0.0
  %194 = vmatpush.xpose.msra.mxu0 0.0
  %195 = vmatpush.xpose.msra.mxu0 0.0
  %196 = vmatpush.xpose.msra.mxu0 0.0
  %197 = vmatpush.xpose.msra.mxu0 0.0
  %198 = vmatpush.xpose.msra.mxu0 0.0
  %199 = vmatpush.xpose.msra.mxu0 0.0
  %200 = vmatpush.xpose.msra.mxu0 0.0
  %201 = vmatpush.xpose.msra.mxu0 0.0
  %202 = vmatpush.xpose.msra.mxu0 %v185
  %203 = vmatmul.f32.gmra.mxu0 %v183
  %v204 = vpop.f32.mrf.mxu0
  %v205 = vadd.f32 0.0, %v204
  %206 = vdwg.mxu0
  %v207 = vmul.f32 %v205, 0.35355338
  %v208 = vsel %vm116, %v207, -inf
  %209 = vmax.xlane.f32.xlu0 %v208
  %v210 = vpop.xlane.xlu0 %209
  %v211 = vsub.f32 %v207, %v210
  %v212 = vmul.f32 %v211, 1.442695
  %v213 = vpow.pop %v212
  %v214 = vsel %vm116, %v213, 0.0
  %215 = vadd.xlane.f32.xlu0 %v214
  %v216 = vpop.xlane.xlu0 %215
  %v217 = vrcp.pop %v216
  %v218 = vmul.f32 %v213, %v217
  %219 = vrot.lane.b32.xlu0 %v108, 56
  %v220 = vpop.permute.xlu0 %219
  %v223 = vsel %vm116, %v218, 0
  %225 = vmatpush.msra.mxu0 0.0
  %226 = vmatpush.msra.mxu0 0.0
  %227 = vmatpush.msra.mxu0 0.0
  %228 = vmatpush.msra.mxu0 0.0
  %229 = vmatpush.msra.mxu0 0.0
  %230 = vmatpush.msra.mxu0 0.0
  %231 = vmatpush.msra.mxu0 0.0
  %232 = vmatpush.msra.mxu0 0.0
  %233 = vmatpush.msra.mxu0 0.0
  %234 = vmatpush.msra.mxu0 0.0
  %235 = vmatpush.msra.mxu0 0.0
  %236 = vmatpush.msra.mxu0 0.0
  %237 = vmatpush.msra.mxu0 0.0
  %238 = vmatpush.msra.mxu0 0.0
  %239 = vmatpush.msra.mxu0 0.0
  %240 = vmatpush.msra.mxu0 %v220
  %241 = vmatmul.f32.gmra.mxu0 %v223
  %v242 = vpop.f32.mrf.mxu0
  %v243 = vadd.f32 0.0, %v242
  %244 = vdwg.mxu0
  %v246 = vsel %vm116, %v243, 0
  %248 = vmatpush.msra.mxu0 0.0
  %249 = vmatpush.msra.mxu0 0.0
  %250 = vmatpush.msra.mxu0 0.0
  %251 = vmatpush.msra.mxu0 0.0
  %252 = vmatpush.msra.mxu0 0.0
  %253 = vmatpush.msra.mxu0 0.0
  %254 = vmatpush.msra.mxu0 0.0
  %255 = vmatpush.msra.mxu0 0.0
  %256 = vmatpush.msra.mxu0 0.0
  %257 = vmatpush.msra.mxu0 0.0
  %258 = vmatpush.msra.mxu0 0.0
  %259 = vmatpush.msra.mxu0 0.0
  %260 = vmatpush.msra.mxu0 0.0
  %261 = vmatpush.msra.mxu0 0.0
  %262 = vmatpush.msra.mxu0 0.0
  %263 = vmatpush.msra.mxu0 %v76
  %264 = vmatmul.f32.gmra.mxu0 %v246
  %v265 = vpop.f32.mrf.mxu0
  %v266 = vadd.f32 0.0, %v265
  %267 = vdwg.mxu0
  %v269 = vsel %vm116, %v177, 0
  %271 = vmatpush.msra.mxu0 0.0
  %272 = vmatpush.msra.mxu0 0.0
  %273 = vmatpush.msra.mxu0 0.0
  %274 = vmatpush.msra.mxu0 0.0
  %275 = vmatpush.msra.mxu0 0.0
  %276 = vmatpush.msra.mxu0 0.0
  %277 = vmatpush.msra.mxu0 0.0
  %278 = vmatpush.msra.mxu0 0.0
  %279 = vmatpush.msra.mxu0 0.0
  %280 = vmatpush.msra.mxu0 0.0
  %281 = vmatpush.msra.mxu0 0.0
  %282 = vmatpush.msra.mxu0 0.0
  %283 = vmatpush.msra.mxu0 0.0
  %284 = vmatpush.msra.mxu0 0.0
  %285 = vmatpush.msra.mxu0 0.0
  %286 = vmatpush.msra.mxu0 %v75
  %287 = vmatmul.f32.gmra.mxu0 %v269
  %v288 = vpop.f32.mrf.mxu0
  %v289 = vadd.f32 %v266, %v288
  %290 = vdwg.mxu0
  %291 = vrot.lane.b32.xlu0 %v108, 112
  %v292 = vpop.permute.xlu0 %291
  %293 = vrot.lane.b32.xlu0 %v108, 80
  %v294 = vpop.permute.xlu0 %293
  %v295 = vsel %vm116, %v292, 0
  %v297 = vsel %vm116, %v294, 0
  %299 = vmatpush.xpose.msra.mxu0 0.0
  %300 = vmatpush.xpose.msra.mxu0 0.0
  %301 = vmatpush.xpose.msra.mxu0 0.0
  %302 = vmatpush.xpose.msra.mxu0 0.0
  %303 = vmatpush.xpose.msra.mxu0 0.0
  %304 = vmatpush.xpose.msra.mxu0 0.0
  %305 = vmatpush.xpose.msra.mxu0 0.0
  %306 = vmatpush.xpose.msra.mxu0 0.0
  %307 = vmatpush.xpose.msra.mxu0 0.0
  %308 = vmatpush.xpose.msra.mxu0 0.0
  %309 = vmatpush.xpose.msra.mxu0 0.0
  %310 = vmatpush.xpose.msra.mxu0 0.0
  %311 = vmatpush.xpose.msra.mxu0 0.0
  %312 = vmatpush.xpose.msra.mxu0 0.0
  %313 = vmatpush.xpose.msra.mxu0 0.0
  %314 = vmatpush.xpose.msra.mxu0 %v297
  %315 = vmatmul.f32.gmra.mxu0 %v295
  %v316 = vpop.f32.mrf.mxu0
  %v317 = vadd.f32 0.0, %v316
  %318 = vdwg.mxu0
  %v319 = vmul.f32 %v317, 0.35355338
  %v320 = vsel %vm116, %v319, -inf
  %321 = vmax.xlane.f32.xlu0 %v320
  %v322 = vpop.xlane.xlu0 %321
  %v323 = vsub.f32 %v319, %v322
  %v324 = vmul.f32 %v323, 1.442695
  %v325 = vpow.pop %v324
  %v326 = vsel %vm116, %v325, 0.0
  %327 = vadd.xlane.f32.xlu0 %v326
  %v328 = vpop.xlane.xlu0 %327
  %v329 = vrcp.pop %v328
  %v330 = vmul.f32 %v325, %v329
  %331 = vrot.lane.b32.xlu0 %v108, 48
  %v332 = vpop.permute.xlu0 %331
  %v335 = vsel %vm116, %v330, 0
  %337 = vmatpush.msra.mxu0 0.0
  %338 = vmatpush.msra.mxu0 0.0
  %339 = vmatpush.msra.mxu0 0.0
  %340 = vmatpush.msra.mxu0 0.0
  %341 = vmatpush.msra.mxu0 0.0
  %342 = vmatpush.msra.mxu0 0.0
  %343 = vmatpush.msra.mxu0 0.0
  %344 = vmatpush.msra.mxu0 0.0
  %345 = vmatpush.msra.mxu0 0.0
  %346 = vmatpush.msra.mxu0 0.0
  %347 = vmatpush.msra.mxu0 0.0
  %348 = vmatpush.msra.mxu0 0.0
  %349 = vmatpush.msra.mxu0 0.0
  %350 = vmatpush.msra.mxu0 0.0
  %351 = vmatpush.msra.mxu0 0.0
  %352 = vmatpush.msra.mxu0 %v332
  %353 = vmatmul.f32.gmra.mxu0 %v335
  %v354 = vpop.f32.mrf.mxu0
  %v355 = vadd.f32 0.0, %v354
  %356 = vdwg.mxu0
  %v358 = vsel %vm116, %v355, 0
  %360 = vmatpush.msra.mxu0 0.0
  %361 = vmatpush.msra.mxu0 0.0
  %362 = vmatpush.msra.mxu0 0.0
  %363 = vmatpush.msra.mxu0 0.0
  %364 = vmatpush.msra.mxu0 0.0
  %365 = vmatpush.msra.mxu0 0.0
  %366 = vmatpush.msra.mxu0 0.0
  %367 = vmatpush.msra.mxu0 0.0
  %368 = vmatpush.msra.mxu0 0.0
  %369 = vmatpush.msra.mxu0 0.0
  %370 = vmatpush.msra.mxu0 0.0
  %371 = vmatpush.msra.mxu0 0.0
  %372 = vmatpush.msra.mxu0 0.0
  %373 = vmatpush.msra.mxu0 0.0
  %374 = vmatpush.msra.mxu0 0.0
  %375 = vmatpush.msra.mxu0 %v77
  %376 = vmatmul.f32.gmra.mxu0 %v358
  %v377 = vpop.f32.mrf.mxu0
  %v378 = vadd.f32 0.0, %v377
  %379 = vdwg.mxu0
  %v380 = vadd.f32 %v289, %v378
  %381 = vrot.lane.b32.xlu0 %v108, 104
  %v382 = vpop.permute.xlu0 %381
  %383 = vrot.lane.b32.xlu0 %v108, 72
  %v384 = vpop.permute.xlu0 %383
  %v385 = vsel %vm116, %v382, 0
  %v387 = vsel %vm116, %v384, 0
  %389 = vmatpush.xpose.msra.mxu0 0.0
  %390 = vmatpush.xpose.msra.mxu0 0.0
  %391 = vmatpush.xpose.msra.mxu0 0.0
  %392 = vmatpush.xpose.msra.mxu0 0.0
  %393 = vmatpush.xpose.msra.mxu0 0.0
  %394 = vmatpush.xpose.msra.mxu0 0.0
  %395 = vmatpush.xpose.msra.mxu0 0.0
  %396 = vmatpush.xpose.msra.mxu0 0.0
  %397 = vmatpush.xpose.msra.mxu0 0.0
  %398 = vmatpush.xpose.msra.mxu0 0.0
  %399 = vmatpush.xpose.msra.mxu0 0.0
  %400 = vmatpush.xpose.msra.mxu0 0.0
  %401 = vmatpush.xpose.msra.mxu0 0.0
  %402 = vmatpush.xpose.msra.mxu0 0.0
  %403 = vmatpush.xpose.msra.mxu0 0.0
  %404 = vmatpush.xpose.msra.mxu0 %v387
  %405 = vmatmul.f32.gmra.mxu0 %v385
  %v406 = vpop.f32.mrf.mxu0
  %v407 = vadd.f32 0.0, %v406
  %408 = vdwg.mxu0
  %v409 = vmul.f32 %v407, 0.35355338
  %v410 = vsel %vm116, %v409, -inf
  %411 = vmax.xlane.f32.xlu0 %v410
  %v412 = vpop.xlane.xlu0 %411
  %v413 = vsub.f32 %v409, %v412
  %v414 = vmul.f32 %v413, 1.442695
  %v415 = vpow.pop %v414
  %v416 = vsel %vm116, %v415, 0.0
  %417 = vadd.xlane.f32.xlu0 %v416
  %v418 = vpop.xlane.xlu0 %417
  %v419 = vrcp.pop %v418
  %v420 = vmul.f32 %v415, %v419
  %421 = vrot.lane.b32.xlu0 %v108, 40
  %v422 = vpop.permute.xlu0 %421
  %v425 = vsel %vm116, %v420, 0
  %427 = vmatpush.msra.mxu0 0.0
  %428 = vmatpush.msra.mxu0 0.0
  %429 = vmatpush.msra.mxu0 0.0
  %430 = vmatpush.msra.mxu0 0.0
  %431 = vmatpush.msra.mxu0 0.0
  %432 = vmatpush.msra.mxu0 0.0
  %433 = vmatpush.msra.mxu0 0.0
  %434 = vmatpush.msra.mxu0 0.0
  %435 = vmatpush.msra.mxu0 0.0
  %436 = vmatpush.msra.mxu0 0.0
  %437 = vmatpush.msra.mxu0 0.0
  %438 = vmatpush.msra.mxu0 0.0
  %439 = vmatpush.msra.mxu0 0.0
  %440 = vmatpush.msra.mxu0 0.0
  %441 = vmatpush.msra.mxu0 0.0
  %442 = vmatpush.msra.mxu0 %v422
  %443 = vmatmul.f32.gmra.mxu0 %v425
  %v444 = vpop.f32.mrf.mxu0
  %v445 = vadd.f32 0.0, %v444
  %446 = vdwg.mxu0
  %v448 = vsel %vm116, %v445, 0
  %450 = vmatpush.msra.mxu0 0.0
  %451 = vmatpush.msra.mxu0 0.0
  %452 = vmatpush.msra.mxu0 0.0
  %453 = vmatpush.msra.mxu0 0.0
  %454 = vmatpush.msra.mxu0 0.0
  %455 = vmatpush.msra.mxu0 0.0
  %456 = vmatpush.msra.mxu0 0.0
  %457 = vmatpush.msra.mxu0 0.0
  %458 = vmatpush.msra.mxu0 0.0
  %459 = vmatpush.msra.mxu0 0.0
  %460 = vmatpush.msra.mxu0 0.0
  %461 = vmatpush.msra.mxu0 0.0
  %462 = vmatpush.msra.mxu0 0.0
  %463 = vmatpush.msra.mxu0 0.0
  %464 = vmatpush.msra.mxu0 0.0
  %465 = vmatpush.msra.mxu0 %v78
  %466 = vmatmul.f32.gmra.mxu0 %v448
  %v467 = vpop.f32.mrf.mxu0
  %v468 = vadd.f32 0.0, %v467
  %469 = vdwg.mxu0
  %v470 = vadd.f32 %v380, %v468
  %v472 = vperm.slane %v79, 0
  %v474 = vadd.f32 %v470, %v472
  %476 = vrot.lane.b32.xlu0 %v111, 96
  %v477 = vpop.permute.xlu0 %476
  %v478 = vsel %vm116, %v111, 0
  %v480 = vsel %vm116, %v477, 0
  %482 = vmatpush.xpose.msra.mxu0 0.0
  %483 = vmatpush.xpose.msra.mxu0 0.0
  %484 = vmatpush.xpose.msra.mxu0 0.0
  %485 = vmatpush.xpose.msra.mxu0 0.0
  %486 = vmatpush.xpose.msra.mxu0 0.0
  %487 = vmatpush.xpose.msra.mxu0 0.0
  %488 = vmatpush.xpose.msra.mxu0 0.0
  %489 = vmatpush.xpose.msra.mxu0 0.0
  %490 = vmatpush.xpose.msra.mxu0 0.0
  %491 = vmatpush.xpose.msra.mxu0 0.0
  %492 = vmatpush.xpose.msra.mxu0 0.0
  %493 = vmatpush.xpose.msra.mxu0 0.0
  %494 = vmatpush.xpose.msra.mxu0 0.0
  %495 = vmatpush.xpose.msra.mxu0 0.0
  %496 = vmatpush.xpose.msra.mxu0 0.0
  %497 = vmatpush.xpose.msra.mxu0 %v480
  %498 = vmatmul.f32.gmra.mxu0 %v478
  %v499 = vpop.f32.mrf.mxu0
  %v500 = vadd.f32 0.0, %v499
  %501 = vdwg.mxu0
  %v502 = vmul.f32 %v500, 0.35355338
  %v503 = vsel %vm116, %v502, -inf
  %504 = vmax.xlane.f32.xlu0 %v503
  %v505 = vpop.xlane.xlu0 %504
  %v506 = vsub.f32 %v502, %v505
  %v507 = vmul.f32 %v506, 1.442695
  %v508 = vpow.pop %v507
  %v509 = vsel %vm116, %v508, 0.0
  %510 = vadd.xlane.f32.xlu0 %v509
  %v511 = vpop.xlane.xlu0 %510
  %v512 = vrcp.pop %v511
  %v513 = vmul.f32 %v508, %v512
  %514 = vrot.lane.b32.xlu0 %v111, 64
  %v515 = vpop.permute.xlu0 %514
  %v518 = vsel %vm116, %v513, 0
  %520 = vmatpush.msra.mxu0 0.0
  %521 = vmatpush.msra.mxu0 0.0
  %522 = vmatpush.msra.mxu0 0.0
  %523 = vmatpush.msra.mxu0 0.0
  %524 = vmatpush.msra.mxu0 0.0
  %525 = vmatpush.msra.mxu0 0.0
  %526 = vmatpush.msra.mxu0 0.0
  %527 = vmatpush.msra.mxu0 0.0
  %528 = vmatpush.msra.mxu0 0.0
  %529 = vmatpush.msra.mxu0 0.0
  %530 = vmatpush.msra.mxu0 0.0
  %531 = vmatpush.msra.mxu0 0.0
  %532 = vmatpush.msra.mxu0 0.0
  %533 = vmatpush.msra.mxu0 0.0
  %534 = vmatpush.msra.mxu0 0.0
  %535 = vmatpush.msra.mxu0 %v515
  %536 = vmatmul.f32.gmra.mxu0 %v518
  %v537 = vpop.f32.mrf.mxu0
  %v538 = vadd.f32 0.0, %v537
  %539 = vdwg.mxu0
  %540 = vrot.lane.b32.xlu0 %v111, 120
  %v541 = vpop.permute.xlu0 %540
  %542 = vrot.lane.b32.xlu0 %v111, 88
  %v543 = vpop.permute.xlu0 %542
  %v544 = vsel %vm116, %v541, 0
  %v546 = vsel %vm116, %v543, 0
  %548 = vmatpush.xpose.msra.mxu0 0.0
  %549 = vmatpush.xpose.msra.mxu0 0.0
  %550 = vmatpush.xpose.msra.mxu0 0.0
  %551 = vmatpush.xpose.msra.mxu0 0.0
  %552 = vmatpush.xpose.msra.mxu0 0.0
  %553 = vmatpush.xpose.msra.mxu0 0.0
  %554 = vmatpush.xpose.msra.mxu0 0.0
  %555 = vmatpush.xpose.msra.mxu0 0.0
  %556 = vmatpush.xpose.msra.mxu0 0.0
  %557 = vmatpush.xpose.msra.mxu0 0.0
  %558 = vmatpush.xpose.msra.mxu0 0.0
  %559 = vmatpush.xpose.msra.mxu0 0.0
  %560 = vmatpush.xpose.msra.mxu0 0.0
  %561 = vmatpush.xpose.msra.mxu0 0.0
  %562 = vmatpush.xpose.msra.mxu0 0.0
  %563 = vmatpush.xpose.msra.mxu0 %v546
  %564 = vmatmul.f32.gmra.mxu0 %v544
  %v565 = vpop.f32.mrf.mxu0
  %v566 = vadd.f32 0.0, %v565
  %567 = vdwg.mxu0
  %v568 = vmul.f32 %v566, 0.35355338
  %v569 = vsel %vm116, %v568, -inf
  %570 = vmax.xlane.f32.xlu0 %v569
  %v571 = vpop.xlane.xlu0 %570
  %v572 = vsub.f32 %v568, %v571
  %v573 = vmul.f32 %v572, 1.442695
  %v574 = vpow.pop %v573
  %v575 = vsel %vm116, %v574, 0.0
  %576 = vadd.xlane.f32.xlu0 %v575
  %v577 = vpop.xlane.xlu0 %576
  %v578 = vrcp.pop %v577
  %v579 = vmul.f32 %v574, %v578
  %580 = vrot.lane.b32.xlu0 %v111, 56
  %v581 = vpop.permute.xlu0 %580
  %v584 = vsel %vm116, %v579, 0
  %586 = vmatpush.msra.mxu0 0.0
  %587 = vmatpush.msra.mxu0 0.0
  %588 = vmatpush.msra.mxu0 0.0
  %589 = vmatpush.msra.mxu0 0.0
  %590 = vmatpush.msra.mxu0 0.0
  %591 = vmatpush.msra.mxu0 0.0
  %592 = vmatpush.msra.mxu0 0.0
  %593 = vmatpush.msra.mxu0 0.0
  %594 = vmatpush.msra.mxu0 0.0
  %595 = vmatpush.msra.mxu0 0.0
  %596 = vmatpush.msra.mxu0 0.0
  %597 = vmatpush.msra.mxu0 0.0
  %598 = vmatpush.msra.mxu0 0.0
  %599 = vmatpush.msra.mxu0 0.0
  %600 = vmatpush.msra.mxu0 0.0
  %601 = vmatpush.msra.mxu0 %v581
  %602 = vmatmul.f32.gmra.mxu0 %v584
  %v603 = vpop.f32.mrf.mxu0
  %v604 = vadd.f32 0.0, %v603
  %605 = vdwg.mxu0
  %v607 = vsel %vm116, %v604, 0
  %609 = vmatpush.msra.mxu0 0.0
  %610 = vmatpush.msra.mxu0 0.0
  %611 = vmatpush.msra.mxu0 0.0
  %612 = vmatpush.msra.mxu0 0.0
  %613 = vmatpush.msra.mxu0 0.0
  %614 = vmatpush.msra.mxu0 0.0
  %615 = vmatpush.msra.mxu0 0.0
  %616 = vmatpush.msra.mxu0 0.0
  %617 = vmatpush.msra.mxu0 0.0
  %618 = vmatpush.msra.mxu0 0.0
  %619 = vmatpush.msra.mxu0 0.0
  %620 = vmatpush.msra.mxu0 0.0
  %621 = vmatpush.msra.mxu0 0.0
  %622 = vmatpush.msra.mxu0 0.0
  %623 = vmatpush.msra.mxu0 0.0
  %624 = vmatpush.msra.mxu0 %v76
  %625 = vmatmul.f32.gmra.mxu0 %v607
  %v626 = vpop.f32.mrf.mxu0
  %v627 = vadd.f32 0.0, %v626
  %628 = vdwg.mxu0
  %v630 = vsel %vm116, %v538, 0
  %632 = vmatpush.msra.mxu0 0.0
  %633 = vmatpush.msra.mxu0 0.0
  %634 = vmatpush.msra.mxu0 0.0
  %635 = vmatpush.msra.mxu0 0.0
  %636 = vmatpush.msra.mxu0 0.0
  %637 = vmatpush.msra.mxu0 0.0
  %638 = vmatpush.msra.mxu0 0.0
  %639 = vmatpush.msra.mxu0 0.0
  %640 = vmatpush.msra.mxu0 0.0
  %641 = vmatpush.msra.mxu0 0.0
  %642 = vmatpush.msra.mxu0 0.0
  %643 = vmatpush.msra.mxu0 0.0
  %644 = vmatpush.msra.mxu0 0.0
  %645 = vmatpush.msra.mxu0 0.0
  %646 = vmatpush.msra.mxu0 0.0
  %647 = vmatpush.msra.mxu0 %v75
  %648 = vmatmul.f32.gmra.mxu0 %v630
  %v649 = vpop.f32.mrf.mxu0
  %v650 = vadd.f32 %v627, %v649
  %651 = vdwg.mxu0
  %652 = vrot.lane.b32.xlu0 %v111, 112
  %v653 = vpop.permute.xlu0 %652
  %654 = vrot.lane.b32.xlu0 %v111, 80
  %v655 = vpop.permute.xlu0 %654
  %v656 = vsel %vm116, %v653, 0
  %v658 = vsel %vm116, %v655, 0
  %660 = vmatpush.xpose.msra.mxu0 0.0
  %661 = vmatpush.xpose.msra.mxu0 0.0
  %662 = vmatpush.xpose.msra.mxu0 0.0
  %663 = vmatpush.xpose.msra.mxu0 0.0
  %664 = vmatpush.xpose.msra.mxu0 0.0
  %665 = vmatpush.xpose.msra.mxu0 0.0
  %666 = vmatpush.xpose.msra.mxu0 0.0
  %667 = vmatpush.xpose.msra.mxu0 0.0
  %668 = vmatpush.xpose.msra.mxu0 0.0
  %669 = vmatpush.xpose.msra.mxu0 0.0
  %670 = vmatpush.xpose.msra.mxu0 0.0
  %671 = vmatpush.xpose.msra.mxu0 0.0
  %672 = vmatpush.xpose.msra.mxu0 0.0
  %673 = vmatpush.xpose.msra.mxu0 0.0
  %674 = vmatpush.xpose.msra.mxu0 0.0
  %675 = vmatpush.xpose.msra.mxu0 %v658
  %676 = vmatmul.f32.gmra.mxu0 %v656
  %v677 = vpop.f32.mrf.mxu0
  %v678 = vadd.f32 0.0, %v677
  %679 = vdwg.mxu0
  %v680 = vmul.f32 %v678, 0.35355338
  %v681 = vsel %vm116, %v680, -inf
  %682 = vmax.xlane.f32.xlu0 %v681
  %v683 = vpop.xlane.xlu0 %682
  %v684 = vsub.f32 %v680, %v683
  %v685 = vmul.f32 %v684, 1.442695
  %v686 = vpow.pop %v685
  %v687 = vsel %vm116, %v686, 0.0
  %688 = vadd.xlane.f32.xlu0 %v687
  %v689 = vpop.xlane.xlu0 %688
  %v690 = vrcp.pop %v689
  %v691 = vmul.f32 %v686, %v690
  %692 = vrot.lane.b32.xlu0 %v111, 48
  %v693 = vpop.permute.xlu0 %692
  %v696 = vsel %vm116, %v691, 0
  %698 = vmatpush.msra.mxu0 0.0
  %699 = vmatpush.msra.mxu0 0.0
  %700 = vmatpush.msra.mxu0 0.0
  %701 = vmatpush.msra.mxu0 0.0
  %702 = vmatpush.msra.mxu0 0.0
  %703 = vmatpush.msra.mxu0 0.0
  %704 = vmatpush.msra.mxu0 0.0
  %705 = vmatpush.msra.mxu0 0.0
  %706 = vmatpush.msra.mxu0 0.0
  %707 = vmatpush.msra.mxu0 0.0
  %708 = vmatpush.msra.mxu0 0.0
  %709 = vmatpush.msra.mxu0 0.0
  %710 = vmatpush.msra.mxu0 0.0
  %711 = vmatpush.msra.mxu0 0.0
  %712 = vmatpush.msra.mxu0 0.0
  %713 = vmatpush.msra.mxu0 %v693
  %714 = vmatmul.f32.gmra.mxu0 %v696
  %v715 = vpop.f32.mrf.mxu0
  %v716 = vadd.f32 0.0, %v715
  %717 = vdwg.mxu0
  %v719 = vsel %vm116, %v716, 0
  %721 = vmatpush.msra.mxu0 0.0
  %722 = vmatpush.msra.mxu0 0.0
  %723 = vmatpush.msra.mxu0 0.0
  %724 = vmatpush.msra.mxu0 0.0
  %725 = vmatpush.msra.mxu0 0.0
  %726 = vmatpush.msra.mxu0 0.0
  %727 = vmatpush.msra.mxu0 0.0
  %728 = vmatpush.msra.mxu0 0.0
  %729 = vmatpush.msra.mxu0 0.0
  %730 = vmatpush.msra.mxu0 0.0
  %731 = vmatpush.msra.mxu0 0.0
  %732 = vmatpush.msra.mxu0 0.0
  %733 = vmatpush.msra.mxu0 0.0
  %734 = vmatpush.msra.mxu0 0.0
  %735 = vmatpush.msra.mxu0 0.0
  %736 = vmatpush.msra.mxu0 %v77
  %737 = vmatmul.f32.gmra.mxu0 %v719
  %v738 = vpop.f32.mrf.mxu0
  %v739 = vadd.f32 0.0, %v738
  %740 = vdwg.mxu0
  %v741 = vadd.f32 %v650, %v739
  %742 = vrot.lane.b32.xlu0 %v111, 104
  %v743 = vpop.permute.xlu0 %742
  %744 = vrot.lane.b32.xlu0 %v111, 72
  %v745 = vpop.permute.xlu0 %744
  %v746 = vsel %vm116, %v743, 0
  %v748 = vsel %vm116, %v745, 0
  %750 = vmatpush.xpose.msra.mxu0 0.0
  %751 = vmatpush.xpose.msra.mxu0 0.0
  %752 = vmatpush.xpose.msra.mxu0 0.0
  %753 = vmatpush.xpose.msra.mxu0 0.0
  %754 = vmatpush.xpose.msra.mxu0 0.0
  %755 = vmatpush.xpose.msra.mxu0 0.0
  %756 = vmatpush.xpose.msra.mxu0 0.0
  %757 = vmatpush.xpose.msra.mxu0 0.0
  %758 = vmatpush.xpose.msra.mxu0 0.0
  %759 = vmatpush.xpose.msra.mxu0 0.0
  %760 = vmatpush.xpose.msra.mxu0 0.0
  %761 = vmatpush.xpose.msra.mxu0 0.0
  %762 = vmatpush.xpose.msra.mxu0 0.0
  %763 = vmatpush.xpose.msra.mxu0 0.0
  %764 = vmatpush.xpose.msra.mxu0 0.0
  %765 = vmatpush.xpose.msra.mxu0 %v748
  %766 = vmatmul.f32.gmra.mxu0 %v746
  %v767 = vpop.f32.mrf.mxu0
  %v768 = vadd.f32 0.0, %v767
  %769 = vdwg.mxu0
  %v770 = vmul.f32 %v768, 0.35355338
  %v771 = vsel %vm116, %v770, -inf
  %772 = vmax.xlane.f32.xlu0 %v771
  %v773 = vpop.xlane.xlu0 %772
  %v774 = vsub.f32 %v770, %v773
  %v775 = vmul.f32 %v774, 1.442695
  %v776 = vpow.pop %v775
  %v777 = vsel %vm116, %v776, 0.0
  %778 = vadd.xlane.f32.xlu0 %v777
  %v779 = vpop.xlane.xlu0 %778
  %v780 = vrcp.pop %v779
  %v781 = vmul.f32 %v776, %v780
  %782 = vrot.lane.b32.xlu0 %v111, 40
  %v783 = vpop.permute.xlu0 %782
  %v786 = vsel %vm116, %v781, 0
  %788 = vmatpush.msra.mxu0 0.0
  %789 = vmatpush.msra.mxu0 0.0
  %790 = vmatpush.msra.mxu0 0.0
  %791 = vmatpush.msra.mxu0 0.0
  %792 = vmatpush.msra.mxu0 0.0
  %793 = vmatpush.msra.mxu0 0.0
  %794 = vmatpush.msra.mxu0 0.0
  %795 = vmatpush.msra.mxu0 0.0
  %796 = vmatpush.msra.mxu0 0.0
  %797 = vmatpush.msra.mxu0 0.0
  %798 = vmatpush.msra.mxu0 0.0
  %799 = vmatpush.msra.mxu0 0.0
  %800 = vmatpush.msra.mxu0 0.0
  %801 = vmatpush.msra.mxu0 0.0
  %802 = vmatpush.msra.mxu0 0.0
  %803 = vmatpush.msra.mxu0 %v783
  %804 = vmatmul.f32.gmra.mxu0 %v786
  %v805 = vpop.f32.mrf.mxu0
  %v806 = vadd.f32 0.0, %v805
  %807 = vdwg.mxu0
  %v809 = vsel %vm116, %v806, 0
  %811 = vmatpush.msra.mxu0 0.0
  %812 = vmatpush.msra.mxu0 0.0
  %813 = vmatpush.msra.mxu0 0.0
  %814 = vmatpush.msra.mxu0 0.0
  %815 = vmatpush.msra.mxu0 0.0
  %816 = vmatpush.msra.mxu0 0.0
  %817 = vmatpush.msra.mxu0 0.0
  %818 = vmatpush.msra.mxu0 0.0
  %819 = vmatpush.msra.mxu0 0.0
  %820 = vmatpush.msra.mxu0 0.0
  %821 = vmatpush.msra.mxu0 0.0
  %822 = vmatpush.msra.mxu0 0.0
  %823 = vmatpush.msra.mxu0 0.0
  %824 = vmatpush.msra.mxu0 0.0
  %825 = vmatpush.msra.mxu0 0.0
  %826 = vmatpush.msra.mxu0 %v78
  %827 = vmatmul.f32.gmra.mxu0 %v809
  %v828 = vpop.f32.mrf.mxu0
  %v829 = vadd.f32 0.0, %v828
  %830 = vdwg.mxu0
  %v831 = vadd.f32 %v741, %v829
  %v832 = vadd.f32 %v831, %v472
  %v833 = vld [vmem:[%s10] sm:$0x1]
  %v834 = vld [vmem:[%s11] sm:$0x1]
  %v835 = vadd.f32 %v65, %v474
  %v836 = vadd.f32 %v66, %v832
  %v837 = vsel %vm83, %v835, 0.0
  %838 = vadd.xlane.f32.xlu0 %v837
  %v839 = vpop.xlane.xlu0 %838
  %v840 = vsel %vm83, %v836, 0.0
  %841 = vadd.xlane.f32.xlu0 %v840
  %v842 = vpop.xlane.xlu0 %841
  %v843 = vrcp.pop 32.0
  %v844 = vmul.f32 32.0, %v843
  %v845 = vsub.f32 1.0, %v844
  %v846 = vmul.f32 %v843, %v845
  %v847 = vadd.f32 %v843, %v846
  %vm848 = vweird.f32 %v843
  %v849 = vsel %vm848, %v843, %v847
  %v850 = vmul.f32 %v839, %v849
  %v851 = vmul.f32 %v842, %v849
  %v852 = vsub.f32 %v835, %v850
  %v853 = vsub.f32 %v836, %v851
  %v854 = vmul.f32 %v852, %v852
  %v855 = vmul.f32 %v853, %v853
  %v856 = vsel %vm83, %v854, 0.0
  %857 = vadd.xlane.f32.xlu0 %v856
  %v858 = vpop.xlane.xlu0 %857
  %v859 = vsel %vm83, %v855, 0.0
  %860 = vadd.xlane.f32.xlu0 %v859
  %v861 = vpop.xlane.xlu0 %860
  %v862 = vmul.f32 %v858, %v849
  %v863 = vmul.f32 %v861, %v849
  %v864 = vadd.f32 %v862, 1e-05
  %v865 = vadd.f32 %v863, 1e-05
  %v866 = vrsqrt.pop %v864
  %v867 = vmul.f32 %v866, %v864
  %v868 = vmul.f32 %v867, %v866
  %v869 = vmul.f32 0.5, %v868
  %v870 = vsub.f32 1.5, %v869
  %v871 = vmul.f32 %v866, %v870
  %vm872 = vweird.f32 %v864
  %vm873 = vweird.f32 %v866
  %vm874 = vmor %vm872, %vm873
  %v875 = vsel %vm874, %v866, %v871
  %v876 = vrsqrt.pop %v865
  %v877 = vmul.f32 %v876, %v865
  %v878 = vmul.f32 %v877, %v876
  %v879 = vmul.f32 0.5, %v878
  %v880 = vsub.f32 1.5, %v879
  %v881 = vmul.f32 %v876, %v880
  %vm882 = vweird.f32 %v865
  %vm883 = vweird.f32 %v876
  %vm884 = vmor %vm882, %vm883
  %v885 = vsel %vm884, %v876, %v881
  %v886 = vmul.f32 %v852, %v875
  %v887 = vmul.f32 %v853, %v885
  %v889 = vperm.slane %v833, 0
  %v891 = vmul.f32 %v886, %v889
  %v892 = vmul.f32 %v887, %v889
  %v894 = vperm.slane %v834, 0
  %v896 = vadd.f32 %v891, %v894
  %v897 = vadd.f32 %v892, %v894
  %v898 = vld [vmem:[%s6] sm:$0xff]
  %v899 = vld [vmem:[%s6 + $0x8] sm:$0xff]
  %v900 = vld [vmem:[%s6 + $0x10] sm:$0xff]
  %v901 = vld [vmem:[%s6 + $0x18] sm:$0xff]
  %v902 = vld [vmem:[%s7] sm:$0x1]
  %v903 = vld [vmem:[%s8] sm:$0xff]
  %v904 = vld [vmem:[%s8 + $0x8] sm:$0xff]
  %v905 = vld [vmem:[%s8 + $0x10] sm:$0xff]
  %v906 = vld [vmem:[%s8 + $0x18] sm:$0xff]
  %v907 = vld [vmem:[%s9] sm:$0x1]
  %v909 = vperm.slane %v902, 0
  %v912 = vsel %vm83, %v896, 0
  %v915 = vsel %vm83, %v897, 0
  %917 = vmatpush.msra.mxu0 0.0
  %918 = vmatpush.msra.mxu0 0.0
  %919 = vmatpush.msra.mxu0 0.0
  %920 = vmatpush.msra.mxu0 0.0
  %921 = vmatpush.msra.mxu0 0.0
  %922 = vmatpush.msra.mxu0 0.0
  %923 = vmatpush.msra.mxu0 0.0
  %924 = vmatpush.msra.mxu0 0.0
  %925 = vmatpush.msra.mxu0 0.0
  %926 = vmatpush.msra.mxu0 0.0
  %927 = vmatpush.msra.mxu0 0.0
  %928 = vmatpush.msra.mxu0 0.0
  %929 = vmatpush.msra.mxu0 %v901
  %930 = vmatpush.msra.mxu0 %v900
  %931 = vmatpush.msra.mxu0 %v899
  %932 = vmatpush.msra.mxu0 %v898
  %933 = vmatmul.f32.gmra.mxu0 %v912
  %v934 = vpop.f32.mrf.mxu0
  %v935 = vadd.f32 %v909, %v934
  %936 = vmatmul.f32.gmra.mxu0 %v915
  %v937 = vpop.f32.mrf.mxu0
  %v938 = vadd.f32 %v909, %v937
  %939 = vdwg.mxu0
  %944 = vrot.lane.b32.xlu0 %v898, 96
  %v945 = vpop.permute.xlu0 %944
  %946 = vrot.lane.b32.xlu0 %v899, 96
  %v947 = vpop.permute.xlu0 %946
  %948 = vrot.lane.b32.xlu0 %v900, 96
  %v949 = vpop.permute.xlu0 %948
  %950 = vrot.lane.b32.xlu0 %v901, 96
  %v951 = vpop.permute.xlu0 %950
  %956 = vrot.lane.b32.xlu0 %v909, 96
  %v957 = vpop.permute.xlu0 %956
  %v960 = vsel %vm83, %v67, 0
  %v963 = vsel %vm83, %v68, 0
  %v966 = vsel %vm83, %v69, 0
  %968 = vmatpush.msra.mxu0 0.0
  %969 = vmatpush.msra.mxu0 0.0
  %970 = vmatpush.msra.mxu0 0.0
  %971 = vmatpush.msra.mxu0 0.0
  %972 = vmatpush.msra.mxu0 0.0
  %973 = vmatpush.msra.mxu0 0.0
  %974 = vmatpush.msra.mxu0 0.0
  %975 = vmatpush.msra.mxu0 0.0
  %976 = vmatpush.msra.mxu0 0.0
  %977 = vmatpush.msra.mxu0 0.0
  %978 = vmatpush.msra.mxu0 0.0
  %979 = vmatpush.msra.mxu0 0.0
  %980 = vmatpush.msra.mxu0 %v951
  %981 = vmatpush.msra.mxu0 %v949
  %982 = vmatpush.msra.mxu0 %v947
  %983 = vmatpush.msra.mxu0 %v945
  %984 = vmatmul.f32.gmra.mxu0 %v960
  %v985 = vpop.f32.mrf.mxu0
  %v986 = vadd.f32 %v957, %v985
  %987 = vmatmul.f32.gmra.mxu0 %v963
  %v988 = vpop.f32.mrf.mxu0
  %v989 = vadd.f32 %v957, %v988
  %990 = vmatmul.f32.gmra.mxu0 %v966
  %v991 = vpop.f32.mrf.mxu0
  %v992 = vadd.f32 %v957, %v991
  %993 = vdwg.mxu0
  %v995 = vsel %vm116, %v935, 0
  %v998 = vsel %vm116, %v986, 0
  %v1001 = vsel %vm116, %v989, 0
  %1003 = vmatpush.xpose.msra.mxu0 0.0
  %1004 = vmatpush.xpose.msra.mxu0 0.0
  %1005 = vmatpush.xpose.msra.mxu0 0.0
  %1006 = vmatpush.xpose.msra.mxu0 0.0
  %1007 = vmatpush.xpose.msra.mxu0 0.0
  %1008 = vmatpush.xpose.msra.mxu0 0.0
  %1009 = vmatpush.xpose.msra.mxu0 0.0
  %1010 = vmatpush.xpose.msra.mxu0 0.0
  %1011 = vmatpush.xpose.msra.mxu0 0.0
  %1012 = vmatpush.xpose.msra.mxu0 0.0
  %1013 = vmatpush.xpose.msra.mxu0 0.0
  %1014 = vmatpush.xpose.msra.mxu0 0.0
  %1015 = vmatpush.xpose.msra.mxu0 0.0
  %1016 = vmatpush.xpose.msra.mxu0 0.0
  %1017 = vmatpush.xpose.msra.mxu0 %v1001
  %1018 = vmatpush.xpose.msra.mxu0 %v998
  %1019 = vmatmul.f32.gmra.mxu0 %v995
  %v1020 = vpop.f32.mrf.mxu0
  %v1021 = vadd.f32 0.0, %v1020
  %1022 = vdwg.mxu0
  %v1023 = vmul.f32 %v1021, 0.35355338
  %vm1024 = vcmask 80896
  %v1025 = vsel %vm1024, %v1023, -inf
  %1026 = vmax.xlane.f32.xlu0 %v1025
  %v1027 = vpop.xlane.xlu0 %1026
  %v1028 = vsub.f32 %v1023, %v1027
  %v1029 = vmul.f32 %v1028, 1.442695
  %v1030 = vpow.pop %v1029
  %v1031 = vsel %vm1024, %v1030, 0.0
  %1032 = vadd.xlane.f32.xlu0 %v1031
  %v1033 = vpop.xlane.xlu0 %1032
  %v1034 = vrcp.pop %v1033
  %v1035 = vmul.f32 %v1030, %v1034
  %1036 = vrot.lane.b32.xlu0 %v986, 96
  %v1037 = vpop.permute.xlu0 %1036
  %1038 = vrot.lane.b32.xlu0 %v989, 96
  %v1039 = vpop.permute.xlu0 %1038
  %v1042 = vsel %vm1024, %v1035, 0
  %vm1044 = vcmask 1041408
  %v1045 = vsel %vm1044, %v1039, 0
  %1047 = vmatpush.msra.mxu0 0.0
  %1048 = vmatpush.msra.mxu0 0.0
  %1049 = vmatpush.msra.mxu0 0.0
  %1050 = vmatpush.msra.mxu0 0.0
  %1051 = vmatpush.msra.mxu0 0.0
  %1052 = vmatpush.msra.mxu0 0.0
  %1053 = vmatpush.msra.mxu0 0.0
  %1054 = vmatpush.msra.mxu0 0.0
  %1055 = vmatpush.msra.mxu0 0.0
  %1056 = vmatpush.msra.mxu0 0.0
  %1057 = vmatpush.msra.mxu0 0.0
  %1058 = vmatpush.msra.mxu0 0.0
  %1059 = vmatpush.msra.mxu0 0.0
  %1060 = vmatpush.msra.mxu0 0.0
  %1061 = vmatpush.msra.mxu0 %v1045
  %1062 = vmatpush.msra.mxu0 %v1037
  %1063 = vmatmul.f32.gmra.mxu0 %v1042
  %v1064 = vpop.f32.mrf.mxu0
  %v1065 = vadd.f32 0.0, %v1064
  %1066 = vdwg.mxu0
  %1067 = vrot.lane.b32.xlu0 %v935, 120
  %v1068 = vpop.permute.xlu0 %1067
  %1069 = vrot.lane.b32.xlu0 %v986, 120
  %v1070 = vpop.permute.xlu0 %1069
  %1071 = vrot.lane.b32.xlu0 %v989, 120
  %v1072 = vpop.permute.xlu0 %1071
  %v1073 = vsel %vm116, %v1068, 0
  %v1075 = vsel %vm116, %v1070, 0
  %v1077 = vsel %vm116, %v1072, 0
  %1079 = vmatpush.xpose.msra.mxu0 0.0
  %1080 = vmatpush.xpose.msra.mxu0 0.0
  %1081 = vmatpush.xpose.msra.mxu0 0.0
  %1082 = vmatpush.xpose.msra.mxu0 0.0
  %1083 = vmatpush.xpose.msra.mxu0 0.0
  %1084 = vmatpush.xpose.msra.mxu0 0.0
  %1085 = vmatpush.xpose.msra.mxu0 0.0
  %1086 = vmatpush.xpose.msra.mxu0 0.0
  %1087 = vmatpush.xpose.msra.mxu0 0.0
  %1088 = vmatpush.xpose.msra.mxu0 0.0
  %1089 = vmatpush.xpose.msra.mxu0 0.0
  %1090 = vmatpush.xpose.msra.mxu0 0.0
  %1091 = vmatpush.xpose.msra.mxu0 0.0
  %1092 = vmatpush.xpose.msra.mxu0 0.0
  %1093 = vmatpush.xpose.msra.mxu0 %v1077
  %1094 = vmatpush.xpose.msra.mxu0 %v1075
  %1095 = vmatmul.f32.gmra.mxu0 %v1073
  %v1096 = vpop.f32.mrf.mxu0
  %v1097 = vadd.f32 0.0, %v1096
  %1098 = vdwg.mxu0
  %v1099 = vmul.f32 %v1097, 0.35355338
  %v1100 = vsel %vm1024, %v1099, -inf
  %1101 = vmax.xlane.f32.xlu0 %v1100
  %v1102 = vpop.xlane.xlu0 %1101
  %v1103 = vsub.f32 %v1099, %v1102
  %v1104 = vmul.f32 %v1103, 1.442695
  %v1105 = vpow.pop %v1104
  %v1106 = vsel %vm1024, %v1105, 0.0
  %1107 = vadd.xlane.f32.xlu0 %v1106
  %v1108 = vpop.xlane.xlu0 %1107
  %v1109 = vrcp.pop %v1108
  %v1110 = vmul.f32 %v1105, %v1109
  %1111 = vrot.lane.b32.xlu0 %v986, 88
  %v1112 = vpop.permute.xlu0 %1111
  %1113 = vrot.lane.b32.xlu0 %v989, 88
  %v1114 = vpop.permute.xlu0 %1113
  %v1117 = vsel %vm1024, %v1110, 0
  %v1119 = vsel %vm1044, %v1114, 0
  %1121 = vmatpush.msra.mxu0 0.0
  %1122 = vmatpush.msra.mxu0 0.0
  %1123 = vmatpush.msra.mxu0 0.0
  %1124 = vmatpush.msra.mxu0 0.0
  %1125 = vmatpush.msra.mxu0 0.0
  %1126 = vmatpush.msra.mxu0 0.0
  %1127 = vmatpush.msra.mxu0 0.0
  %1128 = vmatpush.msra.mxu0 0.0
  %1129 = vmatpush.msra.mxu0 0.0
  %1130 = vmatpush.msra.mxu0 0.0
  %1131 = vmatpush.msra.mxu0 0.0
  %1132 = vmatpush.msra.mxu0 0.0
  %1133 = vmatpush.msra.mxu0 0.0
  %1134 = vmatpush.msra.mxu0 0.0
  %1135 = vmatpush.msra.mxu0 %v1119
  %1136 = vmatpush.msra.mxu0 %v1112
  %1137 = vmatmul.f32.gmra.mxu0 %v1117
  %v1138 = vpop.f32.mrf.mxu0
  %v1139 = vadd.f32 0.0, %v1138
  %1140 = vdwg.mxu0
  %v1142 = vsel %vm116, %v1139, 0
  %1144 = vmatpush.msra.mxu0 0.0
  %1145 = vmatpush.msra.mxu0 0.0
  %1146 = vmatpush.msra.mxu0 0.0
  %1147 = vmatpush.msra.mxu0 0.0
  %1148 = vmatpush.msra.mxu0 0.0
  %1149 = vmatpush.msra.mxu0 0.0
  %1150 = vmatpush.msra.mxu0 0.0
  %1151 = vmatpush.msra.mxu0 0.0
  %1152 = vmatpush.msra.mxu0 0.0
  %1153 = vmatpush.msra.mxu0 0.0
  %1154 = vmatpush.msra.mxu0 0.0
  %1155 = vmatpush.msra.mxu0 0.0
  %1156 = vmatpush.msra.mxu0 0.0
  %1157 = vmatpush.msra.mxu0 0.0
  %1158 = vmatpush.msra.mxu0 0.0
  %1159 = vmatpush.msra.mxu0 %v904
  %1160 = vmatmul.f32.gmra.mxu0 %v1142
  %v1161 = vpop.f32.mrf.mxu0
  %v1162 = vadd.f32 0.0, %v1161
  %1163 = vdwg.mxu0
  %v1165 = vsel %vm116, %v1065, 0
  %1167 = vmatpush.msra.mxu0 0.0
  %1168 = vmatpush.msra.mxu0 0.0
  %1169 = vmatpush.msra.mxu0 0.0
  %1170 = vmatpush.msra.mxu0 0.0
  %1171 = vmatpush.msra.mxu0 0.0
  %1172 = vmatpush.msra.mxu0 0.0
  %1173 = vmatpush.msra.mxu0 0.0
  %1174 = vmatpush.msra.mxu0 0.0
  %1175 = vmatpush.msra.mxu0 0.0
  %1176 = vmatpush.msra.mxu0 0.0
  %1177 = vmatpush.msra.mxu0 0.0
  %1178 = vmatpush.msra.mxu0 0.0
  %1179 = vmatpush.msra.mxu0 0.0
  %1180 = vmatpush.msra.mxu0 0.0
  %1181 = vmatpush.msra.mxu0 0.0
  %1182 = vmatpush.msra.mxu0 %v903
  %1183 = vmatmul.f32.gmra.mxu0 %v1165
  %v1184 = vpop.f32.mrf.mxu0
  %v1185 = vadd.f32 %v1162, %v1184
  %1186 = vdwg.mxu0
  %1187 = vrot.lane.b32.xlu0 %v935, 112
  %v1188 = vpop.permute.xlu0 %1187
  %1189 = vrot.lane.b32.xlu0 %v986, 112
  %v1190 = vpop.permute.xlu0 %1189
  %1191 = vrot.lane.b32.xlu0 %v989, 112
  %v1192 = vpop.permute.xlu0 %1191
  %v1193 = vsel %vm116, %v1188, 0
  %v1195 = vsel %vm116, %v1190, 0
  %v1197 = vsel %vm116, %v1192, 0
  %1199 = vmatpush.xpose.msra.mxu0 0.0
  %1200 = vmatpush.xpose.msra.mxu0 0.0
  %1201 = vmatpush.xpose.msra.mxu0 0.0
  %1202 = vmatpush.xpose.msra.mxu0 0.0
  %1203 = vmatpush.xpose.msra.mxu0 0.0
  %1204 = vmatpush.xpose.msra.mxu0 0.0
  %1205 = vmatpush.xpose.msra.mxu0 0.0
  %1206 = vmatpush.xpose.msra.mxu0 0.0
  %1207 = vmatpush.xpose.msra.mxu0 0.0
  %1208 = vmatpush.xpose.msra.mxu0 0.0
  %1209 = vmatpush.xpose.msra.mxu0 0.0
  %1210 = vmatpush.xpose.msra.mxu0 0.0
  %1211 = vmatpush.xpose.msra.mxu0 0.0
  %1212 = vmatpush.xpose.msra.mxu0 0.0
  %1213 = vmatpush.xpose.msra.mxu0 %v1197
  %1214 = vmatpush.xpose.msra.mxu0 %v1195
  %1215 = vmatmul.f32.gmra.mxu0 %v1193
  %v1216 = vpop.f32.mrf.mxu0
  %v1217 = vadd.f32 0.0, %v1216
  %1218 = vdwg.mxu0
  %v1219 = vmul.f32 %v1217, 0.35355338
  %v1220 = vsel %vm1024, %v1219, -inf
  %1221 = vmax.xlane.f32.xlu0 %v1220
  %v1222 = vpop.xlane.xlu0 %1221
  %v1223 = vsub.f32 %v1219, %v1222
  %v1224 = vmul.f32 %v1223, 1.442695
  %v1225 = vpow.pop %v1224
  %v1226 = vsel %vm1024, %v1225, 0.0
  %1227 = vadd.xlane.f32.xlu0 %v1226
  %v1228 = vpop.xlane.xlu0 %1227
  %v1229 = vrcp.pop %v1228
  %v1230 = vmul.f32 %v1225, %v1229
  %1231 = vrot.lane.b32.xlu0 %v986, 80
  %v1232 = vpop.permute.xlu0 %1231
  %1233 = vrot.lane.b32.xlu0 %v989, 80
  %v1234 = vpop.permute.xlu0 %1233
  %v1237 = vsel %vm1024, %v1230, 0
  %v1239 = vsel %vm1044, %v1234, 0
  %1241 = vmatpush.msra.mxu0 0.0
  %1242 = vmatpush.msra.mxu0 0.0
  %1243 = vmatpush.msra.mxu0 0.0
  %1244 = vmatpush.msra.mxu0 0.0
  %1245 = vmatpush.msra.mxu0 0.0
  %1246 = vmatpush.msra.mxu0 0.0
  %1247 = vmatpush.msra.mxu0 0.0
  %1248 = vmatpush.msra.mxu0 0.0
  %1249 = vmatpush.msra.mxu0 0.0
  %1250 = vmatpush.msra.mxu0 0.0
  %1251 = vmatpush.msra.mxu0 0.0
  %1252 = vmatpush.msra.mxu0 0.0
  %1253 = vmatpush.msra.mxu0 0.0
  %1254 = vmatpush.msra.mxu0 0.0
  %1255 = vmatpush.msra.mxu0 %v1239
  %1256 = vmatpush.msra.mxu0 %v1232
  %1257 = vmatmul.f32.gmra.mxu0 %v1237
  %v1258 = vpop.f32.mrf.mxu0
  %v1259 = vadd.f32 0.0, %v1258
  %1260 = vdwg.mxu0
  %v1262 = vsel %vm116, %v1259, 0
  %1264 = vmatpush.msra.mxu0 0.0
  %1265 = vmatpush.msra.mxu0 0.0
  %1266 = vmatpush.msra.mxu0 0.0
  %1267 = vmatpush.msra.mxu0 0.0
  %1268 = vmatpush.msra.mxu0 0.0
  %1269 = vmatpush.msra.mxu0 0.0
  %1270 = vmatpush.msra.mxu0 0.0
  %1271 = vmatpush.msra.mxu0 0.0
  %1272 = vmatpush.msra.mxu0 0.0
  %1273 = vmatpush.msra.mxu0 0.0
  %1274 = vmatpush.msra.mxu0 0.0
  %1275 = vmatpush.msra.mxu0 0.0
  %1276 = vmatpush.msra.mxu0 0.0
  %1277 = vmatpush.msra.mxu0 0.0
  %1278 = vmatpush.msra.mxu0 0.0
  %1279 = vmatpush.msra.mxu0 %v905
  %1280 = vmatmul.f32.gmra.mxu0 %v1262
  %v1281 = vpop.f32.mrf.mxu0
  %v1282 = vadd.f32 0.0, %v1281
  %1283 = vdwg.mxu0
  %v1284 = vadd.f32 %v1185, %v1282
  %1285 = vrot.lane.b32.xlu0 %v935, 104
  %v1286 = vpop.permute.xlu0 %1285
  %1287 = vrot.lane.b32.xlu0 %v986, 104
  %v1288 = vpop.permute.xlu0 %1287
  %1289 = vrot.lane.b32.xlu0 %v989, 104
  %v1290 = vpop.permute.xlu0 %1289
  %v1291 = vsel %vm116, %v1286, 0
  %v1293 = vsel %vm116, %v1288, 0
  %v1295 = vsel %vm116, %v1290, 0
  %1297 = vmatpush.xpose.msra.mxu0 0.0
  %1298 = vmatpush.xpose.msra.mxu0 0.0
  %1299 = vmatpush.xpose.msra.mxu0 0.0
  %1300 = vmatpush.xpose.msra.mxu0 0.0
  %1301 = vmatpush.xpose.msra.mxu0 0.0
  %1302 = vmatpush.xpose.msra.mxu0 0.0
  %1303 = vmatpush.xpose.msra.mxu0 0.0
  %1304 = vmatpush.xpose.msra.mxu0 0.0
  %1305 = vmatpush.xpose.msra.mxu0 0.0
  %1306 = vmatpush.xpose.msra.mxu0 0.0
  %1307 = vmatpush.xpose.msra.mxu0 0.0
  %1308 = vmatpush.xpose.msra.mxu0 0.0
  %1309 = vmatpush.xpose.msra.mxu0 0.0
  %1310 = vmatpush.xpose.msra.mxu0 0.0
  %1311 = vmatpush.xpose.msra.mxu0 %v1295
  %1312 = vmatpush.xpose.msra.mxu0 %v1293
  %1313 = vmatmul.f32.gmra.mxu0 %v1291
  %v1314 = vpop.f32.mrf.mxu0
  %v1315 = vadd.f32 0.0, %v1314
  %1316 = vdwg.mxu0
  %v1317 = vmul.f32 %v1315, 0.35355338
  %v1318 = vsel %vm1024, %v1317, -inf
  %1319 = vmax.xlane.f32.xlu0 %v1318
  %v1320 = vpop.xlane.xlu0 %1319
  %v1321 = vsub.f32 %v1317, %v1320
  %v1322 = vmul.f32 %v1321, 1.442695
  %v1323 = vpow.pop %v1322
  %v1324 = vsel %vm1024, %v1323, 0.0
  %1325 = vadd.xlane.f32.xlu0 %v1324
  %v1326 = vpop.xlane.xlu0 %1325
  %v1327 = vrcp.pop %v1326
  %v1328 = vmul.f32 %v1323, %v1327
  %1329 = vrot.lane.b32.xlu0 %v986, 72
  %v1330 = vpop.permute.xlu0 %1329
  %1331 = vrot.lane.b32.xlu0 %v989, 72
  %v1332 = vpop.permute.xlu0 %1331
  %v1335 = vsel %vm1024, %v1328, 0
  %v1337 = vsel %vm1044, %v1332, 0
  %1339 = vmatpush.msra.mxu0 0.0
  %1340 = vmatpush.msra.mxu0 0.0
  %1341 = vmatpush.msra.mxu0 0.0
  %1342 = vmatpush.msra.mxu0 0.0
  %1343 = vmatpush.msra.mxu0 0.0
  %1344 = vmatpush.msra.mxu0 0.0
  %1345 = vmatpush.msra.mxu0 0.0
  %1346 = vmatpush.msra.mxu0 0.0
  %1347 = vmatpush.msra.mxu0 0.0
  %1348 = vmatpush.msra.mxu0 0.0
  %1349 = vmatpush.msra.mxu0 0.0
  %1350 = vmatpush.msra.mxu0 0.0
  %1351 = vmatpush.msra.mxu0 0.0
  %1352 = vmatpush.msra.mxu0 0.0
  %1353 = vmatpush.msra.mxu0 %v1337
  %1354 = vmatpush.msra.mxu0 %v1330
  %1355 = vmatmul.f32.gmra.mxu0 %v1335
  %v1356 = vpop.f32.mrf.mxu0
  %v1357 = vadd.f32 0.0, %v1356
  %1358 = vdwg.mxu0
  %v1360 = vsel %vm116, %v1357, 0
  %1362 = vmatpush.msra.mxu0 0.0
  %1363 = vmatpush.msra.mxu0 0.0
  %1364 = vmatpush.msra.mxu0 0.0
  %1365 = vmatpush.msra.mxu0 0.0
  %1366 = vmatpush.msra.mxu0 0.0
  %1367 = vmatpush.msra.mxu0 0.0
  %1368 = vmatpush.msra.mxu0 0.0
  %1369 = vmatpush.msra.mxu0 0.0
  %1370 = vmatpush.msra.mxu0 0.0
  %1371 = vmatpush.msra.mxu0 0.0
  %1372 = vmatpush.msra.mxu0 0.0
  %1373 = vmatpush.msra.mxu0 0.0
  %1374 = vmatpush.msra.mxu0 0.0
  %1375 = vmatpush.msra.mxu0 0.0
  %1376 = vmatpush.msra.mxu0 0.0
  %1377 = vmatpush.msra.mxu0 %v906
  %1378 = vmatmul.f32.gmra.mxu0 %v1360
  %v1379 = vpop.f32.mrf.mxu0
  %v1380 = vadd.f32 0.0, %v1379
  %1381 = vdwg.mxu0
  %v1382 = vadd.f32 %v1284, %v1380
  %v1384 = vperm.slane %v907, 0
  %v1386 = vadd.f32 %v1382, %v1384
  %vm1388 = vcmask 1045504
  %v1389 = vrot.slane %v989, 2
  %v1390 = vrot.slane %v992, 2
  %v1391 = vsel %vm1388, %v1389, %v1390
  %v1393 = vsel %vm116, %v938, 0
  %v1395 = vsel %vm116, %v1391, 0
  %v1397 = vsel %vm116, %v1390, 0
  %1399 = vmatpush.xpose.msra.mxu0 0.0
  %1400 = vmatpush.xpose.msra.mxu0 0.0
  %1401 = vmatpush.xpose.msra.mxu0 0.0
  %1402 = vmatpush.xpose.msra.mxu0 0.0
  %1403 = vmatpush.xpose.msra.mxu0 0.0
  %1404 = vmatpush.xpose.msra.mxu0 0.0
  %1405 = vmatpush.xpose.msra.mxu0 0.0
  %1406 = vmatpush.xpose.msra.mxu0 0.0
  %1407 = vmatpush.xpose.msra.mxu0 0.0
  %1408 = vmatpush.xpose.msra.mxu0 0.0
  %1409 = vmatpush.xpose.msra.mxu0 0.0
  %1410 = vmatpush.xpose.msra.mxu0 0.0
  %1411 = vmatpush.xpose.msra.mxu0 0.0
  %1412 = vmatpush.xpose.msra.mxu0 0.0
  %1413 = vmatpush.xpose.msra.mxu0 %v1397
  %1414 = vmatpush.xpose.msra.mxu0 %v1395
  %1415 = vmatmul.f32.gmra.mxu0 %v1393
  %v1416 = vpop.f32.mrf.mxu0
  %v1417 = vadd.f32 0.0, %v1416
  %1418 = vdwg.mxu0
  %v1419 = vmul.f32 %v1417, 0.35355338
  %v1420 = vsel %vm1024, %v1419, -inf
  %1421 = vmax.xlane.f32.xlu0 %v1420
  %v1422 = vpop.xlane.xlu0 %1421
  %v1423 = vsub.f32 %v1419, %v1422
  %v1424 = vmul.f32 %v1423, 1.442695
  %v1425 = vpow.pop %v1424
  %v1426 = vsel %vm1024, %v1425, 0.0
  %1427 = vadd.xlane.f32.xlu0 %v1426
  %v1428 = vpop.xlane.xlu0 %1427
  %v1429 = vrcp.pop %v1428
  %v1430 = vmul.f32 %v1425, %v1429
  %1431 = vrot.lane.b32.xlu0 %v1391, 96
  %v1432 = vpop.permute.xlu0 %1431
  %1433 = vrot.lane.b32.xlu0 %v1390, 96
  %v1434 = vpop.permute.xlu0 %1433
  %v1437 = vsel %vm1024, %v1430, 0
  %v1439 = vsel %vm1044, %v1434, 0
  %1441 = vmatpush.msra.mxu0 0.0
  %1442 = vmatpush.msra.mxu0 0.0
  %1443 = vmatpush.msra.mxu0 0.0
  %1444 = vmatpush.msra.mxu0 0.0
  %1445 = vmatpush.msra.mxu0 0.0
  %1446 = vmatpush.msra.mxu0 0.0
  %1447 = vmatpush.msra.mxu0 0.0
  %1448 = vmatpush.msra.mxu0 0.0
  %1449 = vmatpush.msra.mxu0 0.0
  %1450 = vmatpush.msra.mxu0 0.0
  %1451 = vmatpush.msra.mxu0 0.0
  %1452 = vmatpush.msra.mxu0 0.0
  %1453 = vmatpush.msra.mxu0 0.0
  %1454 = vmatpush.msra.mxu0 0.0
  %1455 = vmatpush.msra.mxu0 %v1439
  %1456 = vmatpush.msra.mxu0 %v1432
  %1457 = vmatmul.f32.gmra.mxu0 %v1437
  %v1458 = vpop.f32.mrf.mxu0
  %v1459 = vadd.f32 0.0, %v1458
  %1460 = vdwg.mxu0
  %1461 = vrot.lane.b32.xlu0 %v938, 120
  %v1462 = vpop.permute.xlu0 %1461
  %1463 = vrot.lane.b32.xlu0 %v1391, 120
  %v1464 = vpop.permute.xlu0 %1463
  %1465 = vrot.lane.b32.xlu0 %v1390, 120
  %v1466 = vpop.permute.xlu0 %1465
  %v1467 = vsel %vm116, %v1462, 0
  %v1469 = vsel %vm116, %v1464, 0
  %v1471 = vsel %vm116, %v1466, 0
  %1473 = vmatpush.xpose.msra.mxu0 0.0
  %1474 = vmatpush.xpose.msra.mxu0 0.0
  %1475 = vmatpush.xpose.msra.mxu0 0.0
  %1476 = vmatpush.xpose.msra.mxu0 0.0
  %1477 = vmatpush.xpose.msra.mxu0 0.0
  %1478 = vmatpush.xpose.msra.mxu0 0.0
  %1479 = vmatpush.xpose.msra.mxu0 0.0
  %1480 = vmatpush.xpose.msra.mxu0 0.0
  %1481 = vmatpush.xpose.msra.mxu0 0.0
  %1482 = vmatpush.xpose.msra.mxu0 0.0
  %1483 = vmatpush.xpose.msra.mxu0 0.0
  %1484 = vmatpush.xpose.msra.mxu0 0.0
  %1485 = vmatpush.xpose.msra.mxu0 0.0
  %1486 = vmatpush.xpose.msra.mxu0 0.0
  %1487 = vmatpush.xpose.msra.mxu0 %v1471
  %1488 = vmatpush.xpose.msra.mxu0 %v1469
  %1489 = vmatmul.f32.gmra.mxu0 %v1467
  %v1490 = vpop.f32.mrf.mxu0
  %v1491 = vadd.f32 0.0, %v1490
  %1492 = vdwg.mxu0
  %v1493 = vmul.f32 %v1491, 0.35355338
  %v1494 = vsel %vm1024, %v1493, -inf
  %1495 = vmax.xlane.f32.xlu0 %v1494
  %v1496 = vpop.xlane.xlu0 %1495
  %v1497 = vsub.f32 %v1493, %v1496
  %v1498 = vmul.f32 %v1497, 1.442695
  %v1499 = vpow.pop %v1498
  %v1500 = vsel %vm1024, %v1499, 0.0
  %1501 = vadd.xlane.f32.xlu0 %v1500
  %v1502 = vpop.xlane.xlu0 %1501
  %v1503 = vrcp.pop %v1502
  %v1504 = vmul.f32 %v1499, %v1503
  %1505 = vrot.lane.b32.xlu0 %v1391, 88
  %v1506 = vpop.permute.xlu0 %1505
  %1507 = vrot.lane.b32.xlu0 %v1390, 88
  %v1508 = vpop.permute.xlu0 %1507
  %v1511 = vsel %vm1024, %v1504, 0
  %v1513 = vsel %vm1044, %v1508, 0
  %1515 = vmatpush.msra.mxu0 0.0
  %1516 = vmatpush.msra.mxu0 0.0
  %1517 = vmatpush.msra.mxu0 0.0
  %1518 = vmatpush.msra.mxu0 0.0
  %1519 = vmatpush.msra.mxu0 0.0
  %1520 = vmatpush.msra.mxu0 0.0
  %1521 = vmatpush.msra.mxu0 0.0
  %1522 = vmatpush.msra.mxu0 0.0
  %1523 = vmatpush.msra.mxu0 0.0
  %1524 = vmatpush.msra.mxu0 0.0
  %1525 = vmatpush.msra.mxu0 0.0
  %1526 = vmatpush.msra.mxu0 0.0
  %1527 = vmatpush.msra.mxu0 0.0
  %1528 = vmatpush.msra.mxu0 0.0
  %1529 = vmatpush.msra.mxu0 %v1513
  %1530 = vmatpush.msra.mxu0 %v1506
  %1531 = vmatmul.f32.gmra.mxu0 %v1511
  %v1532 = vpop.f32.mrf.mxu0
  %v1533 = vadd.f32 0.0, %v1532
  %1534 = vdwg.mxu0
  %v1536 = vsel %vm116, %v1533, 0
  %1538 = vmatpush.msra.mxu0 0.0
  %1539 = vmatpush.msra.mxu0 0.0
  %1540 = vmatpush.msra.mxu0 0.0
  %1541 = vmatpush.msra.mxu0 0.0
  %1542 = vmatpush.msra.mxu0 0.0
  %1543 = vmatpush.msra.mxu0 0.0
  %1544 = vmatpush.msra.mxu0 0.0
  %1545 = vmatpush.msra.mxu0 0.0
  %1546 = vmatpush.msra.mxu0 0.0
  %1547 = vmatpush.msra.mxu0 0.0
  %1548 = vmatpush.msra.mxu0 0.0
  %1549 = vmatpush.msra.mxu0 0.0
  %1550 = vmatpush.msra.mxu0 0.0
  %1551 = vmatpush.msra.mxu0 0.0
  %1552 = vmatpush.msra.mxu0 0.0
  %1553 = vmatpush.msra.mxu0 %v904
  %1554 = vmatmul.f32.gmra.mxu0 %v1536
  %v1555 = vpop.f32.mrf.mxu0
  %v1556 = vadd.f32 0.0, %v1555
  %1557 = vdwg.mxu0
  %v1559 = vsel %vm116, %v1459, 0
  %1561 = vmatpush.msra.mxu0 0.0
  %1562 = vmatpush.msra.mxu0 0.0
  %1563 = vmatpush.msra.mxu0 0.0
  %1564 = vmatpush.msra.mxu0 0.0
  %1565 = vmatpush.msra.mxu0 0.0
  %1566 = vmatpush.msra.mxu0 0.0
  %1567 = vmatpush.msra.mxu0 0.0
  %1568 = vmatpush.msra.mxu0 0.0
  %1569 = vmatpush.msra.mxu0 0.0
  %1570 = vmatpush.msra.mxu0 0.0
  %1571 = vmatpush.msra.mxu0 0.0
  %1572 = vmatpush.msra.mxu0 0.0
  %1573 = vmatpush.msra.mxu0 0.0
  %1574 = vmatpush.msra.mxu0 0.0
  %1575 = vmatpush.msra.mxu0 0.0
  %1576 = vmatpush.msra.mxu0 %v903
  %1577 = vmatmul.f32.gmra.mxu0 %v1559
  %v1578 = vpop.f32.mrf.mxu0
  %v1579 = vadd.f32 %v1556, %v1578
  %1580 = vdwg.mxu0
  %1581 = vrot.lane.b32.xlu0 %v938, 112
  %v1582 = vpop.permute.xlu0 %1581
  %1583 = vrot.lane.b32.xlu0 %v1391, 112
  %v1584 = vpop.permute.xlu0 %1583
  %1585 = vrot.lane.b32.xlu0 %v1390, 112
  %v1586 = vpop.permute.xlu0 %1585
  %v1587 = vsel %vm116, %v1582, 0
  %v1589 = vsel %vm116, %v1584, 0
  %v1591 = vsel %vm116, %v1586, 0
  %1593 = vmatpush.xpose.msra.mxu0 0.0
  %1594 = vmatpush.xpose.msra.mxu0 0.0
  %1595 = vmatpush.xpose.msra.mxu0 0.0
  %1596 = vmatpush.xpose.msra.mxu0 0.0
  %1597 = vmatpush.xpose.msra.mxu0 0.0
  %1598 = vmatpush.xpose.msra.mxu0 0.0
  %1599 = vmatpush.xpose.msra.mxu0 0.0
  %1600 = vmatpush.xpose.msra.mxu0 0.0
  %1601 = vmatpush.xpose.msra.mxu0 0.0
  %1602 = vmatpush.xpose.msra.mxu0 0.0
  %1603 = vmatpush.xpose.msra.mxu0 0.0
  %1604 = vmatpush.xpose.msra.mxu0 0.0
  %1605 = vmatpush.xpose.msra.mxu0 0.0
  %1606 = vmatpush.xpose.msra.mxu0 0.0
  %1607 = vmatpush.xpose.msra.mxu0 %v1591
  %1608 = vmatpush.xpose.msra.mxu0 %v1589
  %1609 = vmatmul.f32.gmra.mxu0 %v1587
  %v1610 = vpop.f32.mrf.mxu0
  %v1611 = vadd.f32 0.0, %v1610
  %1612 = vdwg.mxu0
  %v1613 = vmul.f32 %v1611, 0.35355338
  %v1614 = vsel %vm1024, %v1613, -inf
  %1615 = vmax.xlane.f32.xlu0 %v1614
  %v1616 = vpop.xlane.xlu0 %1615
  %v1617 = vsub.f32 %v1613, %v1616
  %v1618 = vmul.f32 %v1617, 1.442695
  %v1619 = vpow.pop %v1618
  %v1620 = vsel %vm1024, %v1619, 0.0
  %1621 = vadd.xlane.f32.xlu0 %v1620
  %v1622 = vpop.xlane.xlu0 %1621
  %v1623 = vrcp.pop %v1622
  %v1624 = vmul.f32 %v1619, %v1623
  %1625 = vrot.lane.b32.xlu0 %v1391, 80
  %v1626 = vpop.permute.xlu0 %1625
  %1627 = vrot.lane.b32.xlu0 %v1390, 80
  %v1628 = vpop.permute.xlu0 %1627
  %v1631 = vsel %vm1024, %v1624, 0
  %v1633 = vsel %vm1044, %v1628, 0
  %1635 = vmatpush.msra.mxu0 0.0
  %1636 = vmatpush.msra.mxu0 0.0
  %1637 = vmatpush.msra.mxu0 0.0
  %1638 = vmatpush.msra.mxu0 0.0
  %1639 = vmatpush.msra.mxu0 0.0
  %1640 = vmatpush.msra.mxu0 0.0
  %1641 = vmatpush.msra.mxu0 0.0
  %1642 = vmatpush.msra.mxu0 0.0
  %1643 = vmatpush.msra.mxu0 0.0
  %1644 = vmatpush.msra.mxu0 0.0
  %1645 = vmatpush.msra.mxu0 0.0
  %1646 = vmatpush.msra.mxu0 0.0
  %1647 = vmatpush.msra.mxu0 0.0
  %1648 = vmatpush.msra.mxu0 0.0
  %1649 = vmatpush.msra.mxu0 %v1633
  %1650 = vmatpush.msra.mxu0 %v1626
  %1651 = vmatmul.f32.gmra.mxu0 %v1631
  %v1652 = vpop.f32.mrf.mxu0
  %v1653 = vadd.f32 0.0, %v1652
  %1654 = vdwg.mxu0
  %v1656 = vsel %vm116, %v1653, 0
  %1658 = vmatpush.msra.mxu0 0.0
  %1659 = vmatpush.msra.mxu0 0.0
  %1660 = vmatpush.msra.mxu0 0.0
  %1661 = vmatpush.msra.mxu0 0.0
  %1662 = vmatpush.msra.mxu0 0.0
  %1663 = vmatpush.msra.mxu0 0.0
  %1664 = vmatpush.msra.mxu0 0.0
  %1665 = vmatpush.msra.mxu0 0.0
  %1666 = vmatpush.msra.mxu0 0.0
  %1667 = vmatpush.msra.mxu0 0.0
  %1668 = vmatpush.msra.mxu0 0.0
  %1669 = vmatpush.msra.mxu0 0.0
  %1670 = vmatpush.msra.mxu0 0.0
  %1671 = vmatpush.msra.mxu0 0.0
  %1672 = vmatpush.msra.mxu0 0.0
  %1673 = vmatpush.msra.mxu0 %v905
  %1674 = vmatmul.f32.gmra.mxu0 %v1656
  %v1675 = vpop.f32.mrf.mxu0
  %v1676 = vadd.f32 0.0, %v1675
  %1677 = vdwg.mxu0
  %v1678 = vadd.f32 %v1579, %v1676
  %1679 = vrot.lane.b32.xlu0 %v938, 104
  %v1680 = vpop.permute.xlu0 %1679
  %1681 = vrot.lane.b32.xlu0 %v1391, 104
  %v1682 = vpop.permute.xlu0 %1681
  %1683 = vrot.lane.b32.xlu0 %v1390, 104
  %v1684 = vpop.permute.xlu0 %1683
  %v1685 = vsel %vm116, %v1680, 0
  %v1687 = vsel %vm116, %v1682, 0
  %v1689 = vsel %vm116, %v1684, 0
  %1691 = vmatpush.xpose.msra.mxu0 0.0
  %1692 = vmatpush.xpose.msra.mxu0 0.0
  %1693 = vmatpush.xpose.msra.mxu0 0.0
  %1694 = vmatpush.xpose.msra.mxu0 0.0
  %1695 = vmatpush.xpose.msra.mxu0 0.0
  %1696 = vmatpush.xpose.msra.mxu0 0.0
  %1697 = vmatpush.xpose.msra.mxu0 0.0
  %1698 = vmatpush.xpose.msra.mxu0 0.0
  %1699 = vmatpush.xpose.msra.mxu0 0.0
  %1700 = vmatpush.xpose.msra.mxu0 0.0
  %1701 = vmatpush.xpose.msra.mxu0 0.0
  %1702 = vmatpush.xpose.msra.mxu0 0.0
  %1703 = vmatpush.xpose.msra.mxu0 0.0
  %1704 = vmatpush.xpose.msra.mxu0 0.0
  %1705 = vmatpush.xpose.msra.mxu0 %v1689
  %1706 = vmatpush.xpose.msra.mxu0 %v1687
  %1707 = vmatmul.f32.gmra.mxu0 %v1685
  %v1708 = vpop.f32.mrf.mxu0
  %v1709 = vadd.f32 0.0, %v1708
  %1710 = vdwg.mxu0
  %v1711 = vmul.f32 %v1709, 0.35355338
  %v1712 = vsel %vm1024, %v1711, -inf
  %1713 = vmax.xlane.f32.xlu0 %v1712
  %v1714 = vpop.xlane.xlu0 %1713
  %v1715 = vsub.f32 %v1711, %v1714
  %v1716 = vmul.f32 %v1715, 1.442695
  %v1717 = vpow.pop %v1716
  %v1718 = vsel %vm1024, %v1717, 0.0
  %1719 = vadd.xlane.f32.xlu0 %v1718
  %v1720 = vpop.xlane.xlu0 %1719
  %v1721 = vrcp.pop %v1720
  %v1722 = vmul.f32 %v1717, %v1721
  %1723 = vrot.lane.b32.xlu0 %v1391, 72
  %v1724 = vpop.permute.xlu0 %1723
  %1725 = vrot.lane.b32.xlu0 %v1390, 72
  %v1726 = vpop.permute.xlu0 %1725
  %v1729 = vsel %vm1024, %v1722, 0
  %v1731 = vsel %vm1044, %v1726, 0
  %1733 = vmatpush.msra.mxu0 0.0
  %1734 = vmatpush.msra.mxu0 0.0
  %1735 = vmatpush.msra.mxu0 0.0
  %1736 = vmatpush.msra.mxu0 0.0
  %1737 = vmatpush.msra.mxu0 0.0
  %1738 = vmatpush.msra.mxu0 0.0
  %1739 = vmatpush.msra.mxu0 0.0
  %1740 = vmatpush.msra.mxu0 0.0
  %1741 = vmatpush.msra.mxu0 0.0
  %1742 = vmatpush.msra.mxu0 0.0
  %1743 = vmatpush.msra.mxu0 0.0
  %1744 = vmatpush.msra.mxu0 0.0
  %1745 = vmatpush.msra.mxu0 0.0
  %1746 = vmatpush.msra.mxu0 0.0
  %1747 = vmatpush.msra.mxu0 %v1731
  %1748 = vmatpush.msra.mxu0 %v1724
  %1749 = vmatmul.f32.gmra.mxu0 %v1729
  %v1750 = vpop.f32.mrf.mxu0
  %v1751 = vadd.f32 0.0, %v1750
  %1752 = vdwg.mxu0
  %v1754 = vsel %vm116, %v1751, 0
  %1756 = vmatpush.msra.mxu0 0.0
  %1757 = vmatpush.msra.mxu0 0.0
  %1758 = vmatpush.msra.mxu0 0.0
  %1759 = vmatpush.msra.mxu0 0.0
  %1760 = vmatpush.msra.mxu0 0.0
  %1761 = vmatpush.msra.mxu0 0.0
  %1762 = vmatpush.msra.mxu0 0.0
  %1763 = vmatpush.msra.mxu0 0.0
  %1764 = vmatpush.msra.mxu0 0.0
  %1765 = vmatpush.msra.mxu0 0.0
  %1766 = vmatpush.msra.mxu0 0.0
  %1767 = vmatpush.msra.mxu0 0.0
  %1768 = vmatpush.msra.mxu0 0.0
  %1769 = vmatpush.msra.mxu0 0.0
  %1770 = vmatpush.msra.mxu0 0.0
  %1771 = vmatpush.msra.mxu0 %v906
  %1772 = vmatmul.f32.gmra.mxu0 %v1754
  %v1773 = vpop.f32.mrf.mxu0
  %v1774 = vadd.f32 0.0, %v1773
  %1775 = vdwg.mxu0
  %v1776 = vadd.f32 %v1678, %v1774
  %v1777 = vadd.f32 %v1776, %v1384
  %v1778 = vld [vmem:[%s12] sm:$0x1]
  %v1779 = vld [vmem:[%s13] sm:$0x1]
  %v1780 = vadd.f32 %v896, %v1386
  %v1781 = vadd.f32 %v897, %v1777
  %v1782 = vsel %vm83, %v1780, 0.0
  %1783 = vadd.xlane.f32.xlu0 %v1782
  %v1784 = vpop.xlane.xlu0 %1783
  %v1785 = vsel %vm83, %v1781, 0.0
  %1786 = vadd.xlane.f32.xlu0 %v1785
  %v1787 = vpop.xlane.xlu0 %1786
  %v1788 = vmul.f32 %v1784, %v849
  %v1789 = vmul.f32 %v1787, %v849
  %v1790 = vsub.f32 %v1780, %v1788
  %v1791 = vsub.f32 %v1781, %v1789
  %v1792 = vmul.f32 %v1790, %v1790
  %v1793 = vmul.f32 %v1791, %v1791
  %v1794 = vsel %vm83, %v1792, 0.0
  %1795 = vadd.xlane.f32.xlu0 %v1794
  %v1796 = vpop.xlane.xlu0 %1795
  %v1797 = vsel %vm83, %v1793, 0.0
  %1798 = vadd.xlane.f32.xlu0 %v1797
  %v1799 = vpop.xlane.xlu0 %1798
  %v1800 = vmul.f32 %v1796, %v849
  %v1801 = vmul.f32 %v1799, %v849
  %v1802 = vadd.f32 %v1800, 1e-05
  %v1803 = vadd.f32 %v1801, 1e-05
  %v1804 = vrsqrt.pop %v1802
  %v1805 = vmul.f32 %v1804, %v1802
  %v1806 = vmul.f32 %v1805, %v1804
  %v1807 = vmul.f32 0.5, %v1806
  %v1808 = vsub.f32 1.5, %v1807
  %v1809 = vmul.f32 %v1804, %v1808
  %vm1810 = vweird.f32 %v1802
  %vm1811 = vweird.f32 %v1804
  %vm1812 = vmor %vm1810, %vm1811
  %v1813 = vsel %vm1812, %v1804, %v1809
  %v1814 = vrsqrt.pop %v1803
  %v1815 = vmul.f32 %v1814, %v1803
  %v1816 = vmul.f32 %v1815, %v1814
  %v1817 = vmul.f32 0.5, %v1816
  %v1818 = vsub.f32 1.5, %v1817
  %v1819 = vmul.f32 %v1814, %v1818
  %vm1820 = vweird.f32 %v1803
  %vm1821 = vweird.f32 %v1814
  %vm1822 = vmor %vm1820, %vm1821
  %v1823 = vsel %vm1822, %v1814, %v1819
  %v1824 = vmul.f32 %v1790, %v1813
  %v1825 = vmul.f32 %v1791, %v1823
  %v1827 = vperm.slane %v1778, 0
  %v1829 = vmul.f32 %v1824, %v1827
  %v1830 = vmul.f32 %v1825, %v1827
  %v1832 = vperm.slane %v1779, 0
  %v1834 = vadd.f32 %v1829, %v1832
  %v1835 = vadd.f32 %v1830, %v1832
  %v1836 = vld [vmem:[%s16] sm:$0xff]
  %v1837 = vld [vmem:[%s16 + $0x8] sm:$0xff]
  %v1838 = vld [vmem:[%s16 + $0x10] sm:$0xff]
  %v1839 = vld [vmem:[%s16 + $0x18] sm:$0xff]
  %v1840 = vld [vmem:[%s17] sm:$0x1]
  %v1842 = vperm.slane %v1840, 0
  %v1845 = vsel %vm83, %v1834, 0
  %v1848 = vsel %vm83, %v1835, 0
  %1850 = vmatpush.msra.mxu0 0.0
  %1851 = vmatpush.msra.mxu0 0.0
  %1852 = vmatpush.msra.mxu0 0.0
  %1853 = vmatpush.msra.mxu0 0.0
  %1854 = vmatpush.msra.mxu0 0.0
  %1855 = vmatpush.msra.mxu0 0.0
  %1856 = vmatpush.msra.mxu0 0.0
  %1857 = vmatpush.msra.mxu0 0.0
  %1858 = vmatpush.msra.mxu0 0.0
  %1859 = vmatpush.msra.mxu0 0.0
  %1860 = vmatpush.msra.mxu0 0.0
  %1861 = vmatpush.msra.mxu0 0.0
  %1862 = vmatpush.msra.mxu0 %v1839
  %1863 = vmatpush.msra.mxu0 %v1838
  %1864 = vmatpush.msra.mxu0 %v1837
  %1865 = vmatpush.msra.mxu0 %v1836
  %1866 = vmatmul.f32.gmra.mxu0 %v1845
  %v1867 = vpop.f32.mrf.mxu0
  %v1868 = vadd.f32 %v1842, %v1867
  %1869 = vmatmul.f32.gmra.mxu0 %v1848
  %v1870 = vpop.f32.mrf.mxu0
  %v1871 = vadd.f32 %v1842, %v1870
  %1872 = vdwg.mxu0
  %v1873 = vmax.f32 %v1868, 0.0
  %v1874 = vmax.f32 %v1871, 0.0
  %v1875 = vld [vmem:[%s18] sm:$0xff]
  %v1876 = vld [vmem:[%s18 + $0x8] sm:$0xff]
  %v1877 = vld [vmem:[%s18 + $0x10] sm:$0xff]
  %v1878 = vld [vmem:[%s18 + $0x18] sm:$0xff]
  %v1879 = vld [vmem:[%s18 + $0x20] sm:$0xff]
  %v1880 = vld [vmem:[%s18 + $0x28] sm:$0xff]
  %v1881 = vld [vmem:[%s18 + $0x30] sm:$0xff]
  %v1882 = vld [vmem:[%s18 + $0x38] sm:$0xff]
  %v1883 = vld [vmem:[%s18 + $0x40] sm:$0xff]
  %v1884 = vld [vmem:[%s18 + $0x48] sm:$0xff]
  %v1885 = vld [vmem:[%s18 + $0x50] sm:$0xff]
  %v1886 = vld [vmem:[%s18 + $0x58] sm:$0xff]
  %v1887 = vld [vmem:[%s18 + $0x60] sm:$0xff]
  %v1888 = vld [vmem:[%s18 + $0x68] sm:$0xff]
  %v1889 = vld [vmem:[%s18 + $0x70] sm:$0xff]
  %v1890 = vld [vmem:[%s18 + $0x78] sm:$0xff]
  %v1891 = vld [vmem:[%s19] sm:$0x1]
  %v1893 = vperm.slane %v1891, 0
  %1895 = vmatpush.msra.mxu0 %v1890
  %1896 = vmatpush.msra.mxu0 %v1889
  %1897 = vmatpush.msra.mxu0 %v1888
  %1898 = vmatpush.msra.mxu0 %v1887
  %1899 = vmatpush.msra.mxu0 %v1886
  %1900 = vmatpush.msra.mxu0 %v1885
  %1901 = vmatpush.msra.mxu0 %v1884
  %1902 = vmatpush.msra.mxu0 %v1883
  %1903 = vmatpush.msra.mxu0 %v1882
  %1904 = vmatpush.msra.mxu0 %v1881
  %1905 = vmatpush.msra.mxu0 %v1880
  %1906 = vmatpush.msra.mxu0 %v1879
  %1907 = vmatpush.msra.mxu0 %v1878
  %1908 = vmatpush.msra.mxu0 %v1877
  %1909 = vmatpush.msra.mxu0 %v1876
  %1910 = vmatpush.msra.mxu0 %v1875
  %1911 = vmatmul.f32.gmra.mxu0 %v1873
  %v1912 = vpop.f32.mrf.mxu0
  %v1913 = vadd.f32 %v1893, %v1912
  %1914 = vmatmul.f32.gmra.mxu0 %v1874
  %v1915 = vpop.f32.mrf.mxu0
  %v1916 = vadd.f32 %v1893, %v1915
  %1917 = vdwg.mxu0
  %v1918 = vld [vmem:[%s14] sm:$0x1]
  %v1919 = vld [vmem:[%s15] sm:$0x1]
  %v1920 = vadd.f32 %v1834, %v1913
  %v1921 = vadd.f32 %v1835, %v1916
  %v1922 = vsel %vm83, %v1920, 0.0
  %1923 = vadd.xlane.f32.xlu0 %v1922
  %v1924 = vpop.xlane.xlu0 %1923
  %v1925 = vsel %vm83, %v1921, 0.0
  %1926 = vadd.xlane.f32.xlu0 %v1925
  %v1927 = vpop.xlane.xlu0 %1926
  %v1928 = vmul.f32 %v1924, %v849
  %v1929 = vmul.f32 %v1927, %v849
  %v1930 = vsub.f32 %v1920, %v1928
  %v1931 = vsub.f32 %v1921, %v1929
  %v1932 = vmul.f32 %v1930, %v1930
  %v1933 = vmul.f32 %v1931, %v1931
  %v1934 = vsel %vm83, %v1932, 0.0
  %1935 = vadd.xlane.f32.xlu0 %v1934
  %v1936 = vpop.xlane.xlu0 %1935
  %v1937 = vsel %vm83, %v1933, 0.0
  %1938 = vadd.xlane.f32.xlu0 %v1937
  %v1939 = vpop.xlane.xlu0 %1938
  %v1940 = vmul.f32 %v1936, %v849
  %v1941 = vmul.f32 %v1939, %v849
  %v1942 = vadd.f32 %v1940, 1e-05
  %v1943 = vadd.f32 %v1941, 1e-05
  %v1944 = vrsqrt.pop %v1942
  %v1945 = vmul.f32 %v1944, %v1942
  %v1946 = vmul.f32 %v1945, %v1944
  %v1947 = vmul.f32 0.5, %v1946
  %v1948 = vsub.f32 1.5, %v1947
  %v1949 = vmul.f32 %v1944, %v1948
  %vm1950 = vweird.f32 %v1942
  %vm1951 = vweird.f32 %v1944
  %vm1952 = vmor %vm1950, %vm1951
  %v1953 = vsel %vm1952, %v1944, %v1949
  %v1954 = vrsqrt.pop %v1943
  %v1955 = vmul.f32 %v1954, %v1943
  %v1956 = vmul.f32 %v1955, %v1954
  %v1957 = vmul.f32 0.5, %v1956
  %v1958 = vsub.f32 1.5, %v1957
  %v1959 = vmul.f32 %v1954, %v1958
  %vm1960 = vweird.f32 %v1943
  %vm1961 = vweird.f32 %v1954
  %vm1962 = vmor %vm1960, %vm1961
  %v1963 = vsel %vm1962, %v1954, %v1959
  %v1964 = vmul.f32 %v1930, %v1953
  %v1965 = vmul.f32 %v1931, %v1963
  %v1967 = vperm.slane %v1918, 0
  %v1969 = vmul.f32 %v1964, %v1967
  %v1970 = vmul.f32 %v1965, %v1967
  %v1972 = vperm.slane %v1919, 0
  %v1974 = vadd.f32 %v1969, %v1972
  %v1975 = vadd.f32 %v1970, %v1972
  %1976 = vst.msk [vmem:[%s20] sm:$0xff] %vm83, %v1974
  %1977 = vst.msk [vmem:[%s20 + $0x8] sm:$0xff] %vm83, %v1975
  // Predicated region
  $region82: #{decoder_layer_forward.1} parent=0 // pred_check
    _
  $region83: #{decoder_layer_forward.1} parent=0 // pred_check_branch
    %1979 = sbr.rel (0) target = $region85
  $region84: #{decoder_layer_forward.1} parent=0 // pred_region
    _
  $region85: #{decoder_layer_forward.1} parent=0 // pred_fallthru
    _
  // Predicated region
  $region86: #{decoder_layer_forward.1} parent=0 // pred_check
    _
  $region87: #{decoder_layer_forward.1} parent=0 // pred_check_branch
    %1981 = sbr.rel (0) target = $region89
  $region88: #{decoder_layer_forward.1} parent=0 // pred_region
    _
  $region89: #{decoder_layer_forward.1} parent=0 // pred_fallthru
    _

</llo_original>
